<compile_context>
chip_gen: v7x
topology: tpu7x:2x2x1
jax: 0.10.0
libtpu: 0.0.40
codegen_flags: <defaults>
</compile_context>

<pallas_src>
import jax
import jax.numpy as jnp
from jax.experimental import pallas as pl
from jax.experimental.pallas import tpu as pltpu

BN_EPS = 1e-5


def _zero_map(ndim):
    return lambda: (0,) * ndim


# ----------------------------------------------------------------------------
# Single fused kernel: conv1/bn1/relu/pool1 -> conv2/... -> conv3/... -> fc1/bn4
# -> relu -> fc2/bn5 -> relu -> fc3
# ----------------------------------------------------------------------------
def _fused_forward_kernel(xp_ref, w1_ref, sh1_ref, w2_ref, sh2_ref, w3_ref, sh3_ref,
                          wf1_ref, shf1_ref, wf2_ref, shf2_ref, wf3_ref, shf3_ref,
                          o_ref,
                          a1_ref, p1_ref, a2_ref, p2_ref, a3_ref, f_ref):
    B = xp_ref.shape[0]
    K1 = w1_ref.shape[0]
    L = xp_ref.shape[1] - (K1 - 1)          # conv1 input length (pre-padding)
    C1 = w1_ref.shape[1]
    C2 = w2_ref.shape[2]
    C3 = w3_ref.shape[2]
    K2 = w2_ref.shape[0]
    K3 = w3_ref.shape[0]
    L2, L4, L8 = L // 2, L // 4, L // 8

    # Zero the padded intermediate buffers once; interiors are overwritten per
    # batch element, only the boundary rows must stay zero ("same" padding).
    p1_ref[...] = jnp.zeros_like(p1_ref)
    p2_ref[...] = jnp.zeros_like(p2_ref)

    for b in range(B):                       # static unroll over the small batch
        # ---- conv1 (Cin=1, K=5): shifted VPU multiply-adds + folded BN + ReLU
        acc1 = jnp.zeros((L, C1), jnp.float32)
        for k in range(K1):
            acc1 += xp_ref[b, pl.ds(k, L), :] * w1_ref[pl.ds(k, 1), :]
        acc1 = jnp.maximum(acc1 + sh1_ref[...], 0.0)
        a1_ref[...] = acc1
        # MaxPool1d(2,2) via stride-2 reads, write into padded buffer for conv2.
        pooled1 = jnp.maximum(a1_ref[pl.ds(0, L2, 2), :], a1_ref[pl.ds(1, L2, 2), :])
        p1_ref[pl.ds(1, L2), :] = pooled1.astype(p1_ref.dtype)

        # ---- conv2 (32->64, K=3): bf16 MXU matmuls, f32 accumulate
        acc2 = jnp.zeros((L2, C2), jnp.float32)
        for k in range(K2):
            acc2 += jnp.dot(p1_ref[pl.ds(k, L2), :], w2_ref[k],
                            preferred_element_type=jnp.float32)
        acc2 = jnp.maximum(acc2 + sh2_ref[...], 0.0)
        a2_ref[...] = acc2
        pooled2 = jnp.maximum(a2_ref[pl.ds(0, L4, 2), :], a2_ref[pl.ds(1, L4, 2), :])
        p2_ref[pl.ds(1, L4), :] = pooled2.astype(p2_ref.dtype)

        # ---- conv3 (64->128, K=3)
        acc3 = jnp.zeros((L4, C3), jnp.float32)
        for k in range(K3):
            acc3 += jnp.dot(p2_ref[pl.ds(k, L4), :], w3_ref[k],
                            preferred_element_type=jnp.float32)
        acc3 = jnp.maximum(acc3 + sh3_ref[...], 0.0)
        a3_ref[...] = acc3
        # Pool3 + flatten directly into the FC input buffer (column = l*C3 + c;
        # the matching permutation is baked into wf1 at prep time).
        for l in range(L8):
            row = jnp.maximum(a3_ref[pl.ds(2 * l, 1), :],
                              a3_ref[pl.ds(2 * l + 1, 1), :])
            f_ref[pl.ds(b, 1), pl.ds(l * C3, C3)] = row.astype(f_ref.dtype)

    # ---- FC stack (batched, bf16 MXU matmuls, folded BN, dropout = identity)
    h = f_ref[...]                                              # (B, L8*C3) bf16
    y = jnp.dot(h, wf1_ref[...], preferred_element_type=jnp.float32) + shf1_ref[...]
    y = jnp.maximum(y, 0.0)
    y = jnp.dot(y.astype(jnp.bfloat16), wf2_ref[...],
                preferred_element_type=jnp.float32) + shf2_ref[...]
    y = jnp.maximum(y, 0.0)
    y = jnp.dot(y.astype(jnp.bfloat16), wf3_ref[...],
                preferred_element_type=jnp.float32) + shf3_ref[...]
    o_ref[...] = y.astype(o_ref.dtype)


# ----------------------------------------------------------------------------
# One-time parameter preparation: fold conv bias + BN into weights/shifts,
# fold the torch flatten order into fc1's weight, pre-transpose, cast to bf16.
# ----------------------------------------------------------------------------
def prepare_params(p, input_size, hidden_size, num_classes):
    L8 = input_size // 8
    H2 = hidden_size * 2

    def bn_fold(g, beta, m, v):
        s = g / jnp.sqrt(v + BN_EPS)
        return s, beta - m * s

    s1, t1 = bn_fold(p["bn1_g"], p["bn1_b"], p["bn1_m"], p["bn1_v"])
    s2, t2 = bn_fold(p["bn2_g"], p["bn2_b"], p["bn2_m"], p["bn2_v"])
    s3, t3 = bn_fold(p["bn3_g"], p["bn3_b"], p["bn3_m"], p["bn3_v"])
    s4, t4 = bn_fold(p["bn4_g"], p["bn4_b"], p["bn4_m"], p["bn4_v"])
    s5, t5 = bn_fold(p["bn5_g"], p["bn5_b"], p["bn5_m"], p["bn5_v"])

    # Conv weights: torch (Cout, Cin, K) -> (K, Cin, Cout), BN scale folded in.
    w1 = (jnp.transpose(p["conv1_w"], (2, 1, 0)) * s1)[:, 0, :]            # (5, 32) f32 (VPU path)
    sh1 = (p["conv1_b"] * s1 + t1).reshape(1, -1)
    w2 = (jnp.transpose(p["conv2_w"], (2, 1, 0)) * s2).astype(jnp.bfloat16)  # (3, 32, 64)
    sh2 = (p["conv2_b"] * s2 + t2).reshape(1, -1)
    w3 = (jnp.transpose(p["conv3_w"], (2, 1, 0)) * s3).astype(jnp.bfloat16)  # (3, 64, 128)
    sh3 = (p["conv3_b"] * s3 + t3).reshape(1, -1)

    # fc1: torch column index is c*L8 + l; kernel feeds columns as l*128 + c,
    # so permute rows accordingly and fold BN4 scale into the output columns.
    wf1 = (p["fc1_w"] * s4[:, None]).reshape(H2, 128, L8)                  # (out, c, l)
    wf1 = jnp.transpose(wf1, (2, 1, 0)).reshape(L8 * 128, H2).astype(jnp.bfloat16)
    shf1 = (p["fc1_b"] * s4 + t4).reshape(1, -1)
    wf2 = jnp.transpose(p["fc2_w"] * s5[:, None]).astype(jnp.bfloat16)     # (2H, H)
    shf2 = (p["fc2_b"] * s5 + t5).reshape(1, -1)
    wf3 = jnp.transpose(p["fc3_w"]).astype(jnp.bfloat16)                   # (H, nc)
    shf3 = p["fc3_b"].reshape(1, -1)

    return dict(w1=w1, sh1=sh1, w2=w2, sh2=sh2, w3=w3, sh3=sh3,
                wf1=wf1, shf1=shf1, wf2=wf2, shf2=shf2, wf3=wf3, shf3=shf3)


@jax.jit
def forward(x, prm):
    # x: (B, input_size) float32 (matches torch input before unsqueeze(1))
    B, L = x.shape
    if L % 8 != 0:
        raise ValueError("input_size must be divisible by 8 (three /2 pools)")
    C1 = prm["w1"].shape[1]
    C2 = prm["w2"].shape[2]
    C3 = prm["w3"].shape[2]
    nc = prm["wf3"].shape[1]
    L2, L4, L8 = L // 2, L // 4, L // 8

    xp = jnp.pad(x, ((0, 0), (2, 2)))[:, :, None]        # (B, L+4, 1), channels-last

    args = (xp, prm["w1"], prm["sh1"], prm["w2"], prm["sh2"], prm["w3"], prm["sh3"],
            prm["wf1"], prm["shf1"], prm["wf2"], prm["shf2"], prm["wf3"], prm["shf3"])
    in_specs = [pl.BlockSpec(a.shape, _zero_map(a.ndim)) for a in args]

    return pl.pallas_call(
        _fused_forward_kernel,
        out_shape=jax.ShapeDtypeStruct((B, nc), jnp.float32),
        in_specs=in_specs,
        out_specs=pl.BlockSpec((B, nc), _zero_map(2)),
        scratch_shapes=[
            pltpu.VMEM((L, C1), jnp.float32),        # conv1 pre-pool
            pltpu.VMEM((L2 + 2, C1), jnp.bfloat16),  # pooled1, padded for conv2
            pltpu.VMEM((L2, C2), jnp.float32),       # conv2 pre-pool
            pltpu.VMEM((L4 + 2, C2), jnp.bfloat16),  # pooled2, padded for conv3
            pltpu.VMEM((L4, C3), jnp.float32),       # conv3 pre-pool
            pltpu.VMEM((B, L8 * C3), jnp.bfloat16),  # flattened FC input
        ],
    )(*args)


# ----------------------------------------------------------------------------
# Deterministic synthetic parameters (torch layouts) and test driver
# ----------------------------------------------------------------------------
def init_params(key, input_size, hidden_size, num_classes):
    conv_out = input_size // 8
    fc_in = conv_out * 128
    shapes = {
        "conv1_w": (32, 1, 5), "conv1_b": (32,),
        "conv2_w": (64, 32, 3), "conv2_b": (64,),
        "conv3_w": (128, 64, 3), "conv3_b": (128,),
        "fc1_w": (hidden_size * 2, fc_in), "fc1_b": (hidden_size * 2,),
        "fc2_w": (hidden_size, hidden_size * 2), "fc2_b": (hidden_size,),
        "fc3_w": (num_classes, hidden_size), "fc3_b": (num_classes,),
    }
    p = {}
    for name, shp in shapes.items():
        key, sub = jax.random.split(key)
        fan_in = 1
        for d in shp[1:]:
            fan_in *= d
        p[name] = 0.1 * jax.random.normal(sub, shp, jnp.float32) / max(fan_in, 1) ** 0.5
    # BatchNorm (inference) params: gamma, beta, running_mean, running_var.
    for name, c in (("bn1", 32), ("bn2", 64), ("bn3", 128),
                    ("bn4", hidden_size * 2), ("bn5", hidden_size)):
        key, k1 = jax.random.split(key)
        key, k2 = jax.random.split(key)
        key, k3 = jax.random.split(key)
        p[name + "_g"] = 1.0 + 0.1 * jax.random.normal(k1, (c,), jnp.float32)
        p[name + "_b"] = 0.1 * jax.random.normal(k2, (c,), jnp.float32)
        p[name + "_m"] = 0.1 * jax.random.normal(k3, (c,), jnp.float32)
        p[name + "_v"] = jnp.ones((c,), jnp.float32)
    return p


if __name__ == "__main__":
    input_size = 16          # divisible by 8 (three /2 pools)
    hidden_size = 32
    num_classes = 8
    batch = 2

    key = jax.random.PRNGKey(0)
    key, kx = jax.random.split(key)
    params = init_params(key, input_size, hidden_size, num_classes)
    prm = prepare_params(params, input_size, hidden_size, num_classes)   # hoisted: done once
    x = jax.random.normal(kx, (batch, input_size), jnp.float32)

    out = forward(x, prm)
    out = jax.block_until_ready(out)
    assert out.shape == (batch, num_classes), out.shape
    assert bool(jnp.all(jnp.isfinite(out)))
    print("KERNEL_OK")
</pallas_src>

<mosaic_0001>
module attributes {stable_mosaic.version = 11 : i64} {
  func.func @_fused_forward_kernel(%arg0: memref<2x20x1xf32, #tpu.memory_space<vmem>>, %arg1: memref<5x32xf32, #tpu.memory_space<vmem>>, %arg2: memref<1x32xf32, #tpu.memory_space<vmem>>, %arg3: memref<3x32x64xbf16, #tpu.memory_space<vmem>>, %arg4: memref<1x64xf32, #tpu.memory_space<vmem>>, %arg5: memref<3x64x128xbf16, #tpu.memory_space<vmem>>, %arg6: memref<1x128xf32, #tpu.memory_space<vmem>>, %arg7: memref<256x64xbf16, #tpu.memory_space<vmem>>, %arg8: memref<1x64xf32, #tpu.memory_space<vmem>>, %arg9: memref<64x32xbf16, #tpu.memory_space<vmem>>, %arg10: memref<1x32xf32, #tpu.memory_space<vmem>>, %arg11: memref<32x8xbf16, #tpu.memory_space<vmem>>, %arg12: memref<1x8xf32, #tpu.memory_space<vmem>>, %arg13: memref<2x8xf32, #tpu.memory_space<vmem>>, %arg14: memref<16x32xf32, #tpu.memory_space<vmem>>, %arg15: memref<10x32xbf16, #tpu.memory_space<vmem>>, %arg16: memref<8x64xf32, #tpu.memory_space<vmem>>, %arg17: memref<6x64xbf16, #tpu.memory_space<vmem>>, %arg18: memref<4x128xf32, #tpu.memory_space<vmem>>, %arg19: memref<2x256xbf16, #tpu.memory_space<vmem>>) attributes {dimension_semantics = [], scalar_prefetch = 0 : i64, scratch_operands = 6 : i64, tpu.core_type = #tpu.core_type<tc>} {
    %cst = arith.constant 0.000000e+00 : bf16
    %0 = vector.broadcast %cst : bf16 to vector<10x32xbf16>
    %c0 = arith.constant 0 : index
    %c0_0 = arith.constant 0 : index
    %1 = vector.load %arg15[%c0, %c0_0] : memref<10x32xbf16, #tpu.memory_space<vmem>>, vector<10x32xbf16>
    tpu.vector_store %arg15[%c0, %c0_0], %0 {strides = array<i32>} : memref<10x32xbf16, #tpu.memory_space<vmem>>, vector<10x32xbf16>,
    %cst_1 = arith.constant 0.000000e+00 : bf16
    %2 = vector.broadcast %cst_1 : bf16 to vector<6x64xbf16>
    %c0_2 = arith.constant 0 : index
    %c0_3 = arith.constant 0 : index
    %3 = vector.load %arg17[%c0_2, %c0_3] : memref<6x64xbf16, #tpu.memory_space<vmem>>, vector<6x64xbf16>
    tpu.vector_store %arg17[%c0_2, %c0_3], %2 {strides = array<i32>} : memref<6x64xbf16, #tpu.memory_space<vmem>>, vector<6x64xbf16>,
    %cst_4 = arith.constant 0.000000e+00 : f32
    %4 = vector.broadcast %cst_4 : f32 to vector<16x32xf32>
    %c0_5 = arith.constant 0 : index
    %c0_6 = arith.constant 0 : index
    %c0_7 = arith.constant 0 : index
    %5 = vector.load %arg0[%c0_5, %c0_6, %c0_7] : memref<2x20x1xf32, #tpu.memory_space<vmem>>, vector<1x16x1xf32>
    %6 = vector.shape_cast %5 : vector<1x16x1xf32> to vector<16x1xf32>
    %c0_8 = arith.constant 0 : index
    %c0_9 = arith.constant 0 : index
    %7 = vector.load %arg1[%c0_8, %c0_9] : memref<5x32xf32, #tpu.memory_space<vmem>>, vector<1x32xf32>
    %8 = vector.broadcast %6 : vector<16x1xf32> to vector<16x32xf32>
    %9 = vector.broadcast %7 : vector<1x32xf32> to vector<16x32xf32>
    %10 = arith.mulf %8, %9 : vector<16x32xf32>
    %11 = arith.addf %4, %10 : vector<16x32xf32>
    %c0_10 = arith.constant 0 : index
    %c1 = arith.constant 1 : index
    %c0_11 = arith.constant 0 : index
    %12 = vector.load %arg0[%c0_10, %c1, %c0_11] : memref<2x20x1xf32, #tpu.memory_space<vmem>>, vector<1x16x1xf32>
    %13 = vector.shape_cast %12 : vector<1x16x1xf32> to vector<16x1xf32>
    %c1_12 = arith.constant 1 : index
    %c0_13 = arith.constant 0 : index
    %14 = vector.load %arg1[%c1_12, %c0_13] : memref<5x32xf32, #tpu.memory_space<vmem>>, vector<1x32xf32>
    %15 = vector.broadcast %13 : vector<16x1xf32> to vector<16x32xf32>
    %16 = vector.broadcast %14 : vector<1x32xf32> to vector<16x32xf32>
    %17 = arith.mulf %15, %16 : vector<16x32xf32>
    %18 = arith.addf %11, %17 : vector<16x32xf32>
    %c0_14 = arith.constant 0 : index
    %c2 = arith.constant 2 : index
    %c0_15 = arith.constant 0 : index
    %19 = vector.load %arg0[%c0_14, %c2, %c0_15] : memref<2x20x1xf32, #tpu.memory_space<vmem>>, vector<1x16x1xf32>
    %20 = vector.shape_cast %19 : vector<1x16x1xf32> to vector<16x1xf32>
    %c2_16 = arith.constant 2 : index
    %c0_17 = arith.constant 0 : index
    %21 = vector.load %arg1[%c2_16, %c0_17] : memref<5x32xf32, #tpu.memory_space<vmem>>, vector<1x32xf32>
    %22 = vector.broadcast %20 : vector<16x1xf32> to vector<16x32xf32>
    %23 = vector.broadcast %21 : vector<1x32xf32> to vector<16x32xf32>
    %24 = arith.mulf %22, %23 : vector<16x32xf32>
    %25 = arith.addf %18, %24 : vector<16x32xf32>
    %c0_18 = arith.constant 0 : index
    %c3 = arith.constant 3 : index
    %c0_19 = arith.constant 0 : index
    %26 = vector.load %arg0[%c0_18, %c3, %c0_19] : memref<2x20x1xf32, #tpu.memory_space<vmem>>, vector<1x16x1xf32>
    %27 = vector.shape_cast %26 : vector<1x16x1xf32> to vector<16x1xf32>
    %c3_20 = arith.constant 3 : index
    %c0_21 = arith.constant 0 : index
    %28 = vector.load %arg1[%c3_20, %c0_21] : memref<5x32xf32, #tpu.memory_space<vmem>>, vector<1x32xf32>
    %29 = vector.broadcast %27 : vector<16x1xf32> to vector<16x32xf32>
    %30 = vector.broadcast %28 : vector<1x32xf32> to vector<16x32xf32>
    %31 = arith.mulf %29, %30 : vector<16x32xf32>
    %32 = arith.addf %25, %31 : vector<16x32xf32>
    %c0_22 = arith.constant 0 : index
    %c4 = arith.constant 4 : index
    %c0_23 = arith.constant 0 : index
    %33 = vector.load %arg0[%c0_22, %c4, %c0_23] : memref<2x20x1xf32, #tpu.memory_space<vmem>>, vector<1x16x1xf32>
    %34 = vector.shape_cast %33 : vector<1x16x1xf32> to vector<16x1xf32>
    %c4_24 = arith.constant 4 : index
    %c0_25 = arith.constant 0 : index
    %35 = vector.load %arg1[%c4_24, %c0_25] : memref<5x32xf32, #tpu.memory_space<vmem>>, vector<1x32xf32>
    %36 = vector.broadcast %34 : vector<16x1xf32> to vector<16x32xf32>
    %37 = vector.broadcast %35 : vector<1x32xf32> to vector<16x32xf32>
    %38 = arith.mulf %36, %37 : vector<16x32xf32>
    %39 = arith.addf %32, %38 : vector<16x32xf32>
    %c0_26 = arith.constant 0 : index
    %c0_27 = arith.constant 0 : index
    %40 = vector.load %arg2[%c0_26, %c0_27] : memref<1x32xf32, #tpu.memory_space<vmem>>, vector<1x32xf32>
    %41 = vector.broadcast %40 : vector<1x32xf32> to vector<16x32xf32>
    %42 = arith.addf %39, %41 : vector<16x32xf32>
    %cst_28 = arith.constant 0.000000e+00 : f32
    %43 = vector.broadcast %cst_28 : f32 to vector<16x32xf32>
    %44 = arith.maximumf %42, %43 : vector<16x32xf32>
    %c0_29 = arith.constant 0 : index
    %c0_30 = arith.constant 0 : index
    %45 = vector.load %arg14[%c0_29, %c0_30] : memref<16x32xf32, #tpu.memory_space<vmem>>, vector<16x32xf32>
    tpu.vector_store %arg14[%c0_29, %c0_30], %44 {strides = array<i32>} : memref<16x32xf32, #tpu.memory_space<vmem>>, vector<16x32xf32>,
    %c0_31 = arith.constant 0 : index
    %c0_32 = arith.constant 0 : index
    %46 = tpu.strided_load %arg14[%c0_31, %c0_32] {strides = array<i32: 2, 1>} : memref<16x32xf32, #tpu.memory_space<vmem>>, vector<8x32xf32>
    %c1_33 = arith.constant 1 : index
    %c0_34 = arith.constant 0 : index
    %47 = tpu.strided_load %arg14[%c1_33, %c0_34] {strides = array<i32: 2, 1>} : memref<16x32xf32, #tpu.memory_space<vmem>>, vector<8x32xf32>
    %48 = arith.maximumf %46, %47 : vector<8x32xf32>
    %49 = arith.truncf %48 : vector<8x32xf32> to vector<8x32xbf16>
    %c1_35 = arith.constant 1 : index
    %c0_36 = arith.constant 0 : index
    %50 = vector.load %arg15[%c1_35, %c0_36] : memref<10x32xbf16, #tpu.memory_space<vmem>>, vector<8x32xbf16>
    tpu.vector_store %arg15[%c1_35, %c0_36], %49 {strides = array<i32>} : memref<10x32xbf16, #tpu.memory_space<vmem>>, vector<8x32xbf16>,
    %cst_37 = arith.constant 0.000000e+00 : f32
    %51 = vector.broadcast %cst_37 : f32 to vector<8x64xf32>
    %c0_38 = arith.constant 0 : index
    %c0_39 = arith.constant 0 : index
    %52 = vector.load %arg15[%c0_38, %c0_39] : memref<10x32xbf16, #tpu.memory_space<vmem>>, vector<8x32xbf16>
    %c0_40 = arith.constant 0 : index
    %c0_41 = arith.constant 0 : index
    %c0_42 = arith.constant 0 : index
    %53 = vector.load %arg3[%c0_40, %c0_41, %c0_42] : memref<3x32x64xbf16, #tpu.memory_space<vmem>>, vector<1x32x64xbf16>
    %54 = vector.shape_cast %53 : vector<1x32x64xbf16> to vector<32x64xbf16>
    %cst_43 = arith.constant dense<0.000000e+00> : vector<8x64xf32>
    %55 = tpu.matmul %52, %54, %cst_43 {dimension_numbers = #tpu.dot_dimension_numbers<[1], [0], [0], [1], [0, 0, 1, 1], [], []>} : vector<8x32xbf16>, vector<32x64xbf16>, vector<8x64xf32> -> vector<8x64xf32>
    %56 = arith.addf %51, %55 : vector<8x64xf32>
    %c1_44 = arith.constant 1 : index
    %c0_45 = arith.constant 0 : index
    %57 = vector.load %arg15[%c1_44, %c0_45] : memref<10x32xbf16, #tpu.memory_space<vmem>>, vector<8x32xbf16>
    %c1_46 = arith.constant 1 : index
    %c0_47 = arith.constant 0 : index
    %c0_48 = arith.constant 0 : index
    %58 = vector.load %arg3[%c1_46, %c0_47, %c0_48] : memref<3x32x64xbf16, #tpu.memory_space<vmem>>, vector<1x32x64xbf16>
    %59 = vector.shape_cast %58 : vector<1x32x64xbf16> to vector<32x64xbf16>
    %cst_49 = arith.constant dense<0.000000e+00> : vector<8x64xf32>
    %60 = tpu.matmul %57, %59, %cst_49 {dimension_numbers = #tpu.dot_dimension_numbers<[1], [0], [0], [1], [0, 0, 1, 1], [], []>} : vector<8x32xbf16>, vector<32x64xbf16>, vector<8x64xf32> -> vector<8x64xf32>
    %61 = arith.addf %56, %60 : vector<8x64xf32>
    %c2_50 = arith.constant 2 : index
    %c0_51 = arith.constant 0 : index
    %62 = vector.load %arg15[%c2_50, %c0_51] : memref<10x32xbf16, #tpu.memory_space<vmem>>, vector<8x32xbf16>
    %c2_52 = arith.constant 2 : index
    %c0_53 = arith.constant 0 : index
    %c0_54 = arith.constant 0 : index
    %63 = vector.load %arg3[%c2_52, %c0_53, %c0_54] : memref<3x32x64xbf16, #tpu.memory_space<vmem>>, vector<1x32x64xbf16>
    %64 = vector.shape_cast %63 : vector<1x32x64xbf16> to vector<32x64xbf16>
    %cst_55 = arith.constant dense<0.000000e+00> : vector<8x64xf32>
    %65 = tpu.matmul %62, %64, %cst_55 {dimension_numbers = #tpu.dot_dimension_numbers<[1], [0], [0], [1], [0, 0, 1, 1], [], []>} : vector<8x32xbf16>, vector<32x64xbf16>, vector<8x64xf32> -> vector<8x64xf32>
    %66 = arith.addf %61, %65 : vector<8x64xf32>
    %c0_56 = arith.constant 0 : index
    %c0_57 = arith.constant 0 : index
    %67 = vector.load %arg4[%c0_56, %c0_57] : memref<1x64xf32, #tpu.memory_space<vmem>>, vector<1x64xf32>
    %68 = vector.broadcast %67 : vector<1x64xf32> to vector<8x64xf32>
    %69 = arith.addf %66, %68 : vector<8x64xf32>
    %cst_58 = arith.constant 0.000000e+00 : f32
    %70 = vector.broadcast %cst_58 : f32 to vector<8x64xf32>
    %71 = arith.maximumf %69, %70 : vector<8x64xf32>
    %c0_59 = arith.constant 0 : index
    %c0_60 = arith.constant 0 : index
    %72 = vector.load %arg16[%c0_59, %c0_60] : memref<8x64xf32, #tpu.memory_space<vmem>>, vector<8x64xf32>
    tpu.vector_store %arg16[%c0_59, %c0_60], %71 {strides = array<i32>} : memref<8x64xf32, #tpu.memory_space<vmem>>, vector<8x64xf32>,
    %c0_61 = arith.constant 0 : index
    %c0_62 = arith.constant 0 : index
    %73 = tpu.strided_load %arg16[%c0_61, %c0_62] {strides = array<i32: 2, 1>} : memref<8x64xf32, #tpu.memory_space<vmem>>, vector<4x64xf32>
    %c1_63 = arith.constant 1 : index
    %c0_64 = arith.constant 0 : index
    %74 = tpu.strided_load %arg16[%c1_63, %c0_64] {strides = array<i32: 2, 1>} : memref<8x64xf32, #tpu.memory_space<vmem>>, vector<4x64xf32>
    %75 = arith.maximumf %73, %74 : vector<4x64xf32>
    %76 = arith.truncf %75 : vector<4x64xf32> to vector<4x64xbf16>
    %c1_65 = arith.constant 1 : index
    %c0_66 = arith.constant 0 : index
    %77 = vector.load %arg17[%c1_65, %c0_66] : memref<6x64xbf16, #tpu.memory_space<vmem>>, vector<4x64xbf16>
    tpu.vector_store %arg17[%c1_65, %c0_66], %76 {strides = array<i32>} : memref<6x64xbf16, #tpu.memory_space<vmem>>, vector<4x64xbf16>,
    %cst_67 = arith.constant 0.000000e+00 : f32
    %78 = vector.broadcast %cst_67 : f32 to vector<4x128xf32>
    %c0_68 = arith.constant 0 : index
    %c0_69 = arith.constant 0 : index
    %79 = vector.load %arg17[%c0_68, %c0_69] : memref<6x64xbf16, #tpu.memory_space<vmem>>, vector<4x64xbf16>
    %c0_70 = arith.constant 0 : index
    %c0_71 = arith.constant 0 : index
    %c0_72 = arith.constant 0 : index
    %80 = vector.load %arg5[%c0_70, %c0_71, %c0_72] : memref<3x64x128xbf16, #tpu.memory_space<vmem>>, vector<1x64x128xbf16>
    %81 = vector.shape_cast %80 : vector<1x64x128xbf16> to vector<64x128xbf16>
    %cst_73 = arith.constant dense<0.000000e+00> : vector<4x128xf32>
    %82 = tpu.matmul %79, %81, %cst_73 {dimension_numbers = #tpu.dot_dimension_numbers<[1], [0], [0], [1], [0, 0, 1, 1], [], []>} : vector<4x64xbf16>, vector<64x128xbf16>, vector<4x128xf32> -> vector<4x128xf32>
    %83 = arith.addf %78, %82 : vector<4x128xf32>
    %c1_74 = arith.constant 1 : index
    %c0_75 = arith.constant 0 : index
    %84 = vector.load %arg17[%c1_74, %c0_75] : memref<6x64xbf16, #tpu.memory_space<vmem>>, vector<4x64xbf16>
    %c1_76 = arith.constant 1 : index
    %c0_77 = arith.constant 0 : index
    %c0_78 = arith.constant 0 : index
    %85 = vector.load %arg5[%c1_76, %c0_77, %c0_78] : memref<3x64x128xbf16, #tpu.memory_space<vmem>>, vector<1x64x128xbf16>
    %86 = vector.shape_cast %85 : vector<1x64x128xbf16> to vector<64x128xbf16>
    %cst_79 = arith.constant dense<0.000000e+00> : vector<4x128xf32>
    %87 = tpu.matmul %84, %86, %cst_79 {dimension_numbers = #tpu.dot_dimension_numbers<[1], [0], [0], [1], [0, 0, 1, 1], [], []>} : vector<4x64xbf16>, vector<64x128xbf16>, vector<4x128xf32> -> vector<4x128xf32>
    %88 = arith.addf %83, %87 : vector<4x128xf32>
    %c2_80 = arith.constant 2 : index
    %c0_81 = arith.constant 0 : index
    %89 = vector.load %arg17[%c2_80, %c0_81] : memref<6x64xbf16, #tpu.memory_space<vmem>>, vector<4x64xbf16>
    %c2_82 = arith.constant 2 : index
    %c0_83 = arith.constant 0 : index
    %c0_84 = arith.constant 0 : index
    %90 = vector.load %arg5[%c2_82, %c0_83, %c0_84] : memref<3x64x128xbf16, #tpu.memory_space<vmem>>, vector<1x64x128xbf16>
    %91 = vector.shape_cast %90 : vector<1x64x128xbf16> to vector<64x128xbf16>
    %cst_85 = arith.constant dense<0.000000e+00> : vector<4x128xf32>
    %92 = tpu.matmul %89, %91, %cst_85 {dimension_numbers = #tpu.dot_dimension_numbers<[1], [0], [0], [1], [0, 0, 1, 1], [], []>} : vector<4x64xbf16>, vector<64x128xbf16>, vector<4x128xf32> -> vector<4x128xf32>
    %93 = arith.addf %88, %92 : vector<4x128xf32>
    %c0_86 = arith.constant 0 : index
    %c0_87 = arith.constant 0 : index
    %94 = vector.load %arg6[%c0_86, %c0_87] : memref<1x128xf32, #tpu.memory_space<vmem>>, vector<1x128xf32>
    %95 = vector.broadcast %94 : vector<1x128xf32> to vector<4x128xf32>
    %96 = arith.addf %93, %95 : vector<4x128xf32>
    %cst_88 = arith.constant 0.000000e+00 : f32
    %97 = vector.broadcast %cst_88 : f32 to vector<4x128xf32>
    %98 = arith.maximumf %96, %97 : vector<4x128xf32>
    %c0_89 = arith.constant 0 : index
    %c0_90 = arith.constant 0 : index
    %99 = vector.load %arg18[%c0_89, %c0_90] : memref<4x128xf32, #tpu.memory_space<vmem>>, vector<4x128xf32>
    tpu.vector_store %arg18[%c0_89, %c0_90], %98 {strides = array<i32>} : memref<4x128xf32, #tpu.memory_space<vmem>>, vector<4x128xf32>,
    %c0_91 = arith.constant 0 : index
    %c0_92 = arith.constant 0 : index
    %100 = vector.load %arg18[%c0_91, %c0_92] : memref<4x128xf32, #tpu.memory_space<vmem>>, vector<1x128xf32>
    %c1_93 = arith.constant 1 : index
    %c0_94 = arith.constant 0 : index
    %101 = vector.load %arg18[%c1_93, %c0_94] : memref<4x128xf32, #tpu.memory_space<vmem>>, vector<1x128xf32>
    %102 = arith.maximumf %100, %101 : vector<1x128xf32>
    %103 = arith.truncf %102 : vector<1x128xf32> to vector<1x128xbf16>
    %c0_95 = arith.constant 0 : index
    %c0_96 = arith.constant 0 : index
    %104 = vector.load %arg19[%c0_95, %c0_96] : memref<2x256xbf16, #tpu.memory_space<vmem>>, vector<1x128xbf16>
    tpu.vector_store %arg19[%c0_95, %c0_96], %103 {strides = array<i32>} : memref<2x256xbf16, #tpu.memory_space<vmem>>, vector<1x128xbf16>,
    %c2_97 = arith.constant 2 : index
    %c0_98 = arith.constant 0 : index
    %105 = vector.load %arg18[%c2_97, %c0_98] : memref<4x128xf32, #tpu.memory_space<vmem>>, vector<1x128xf32>
    %c3_99 = arith.constant 3 : index
    %c0_100 = arith.constant 0 : index
    %106 = vector.load %arg18[%c3_99, %c0_100] : memref<4x128xf32, #tpu.memory_space<vmem>>, vector<1x128xf32>
    %107 = arith.maximumf %105, %106 : vector<1x128xf32>
    %108 = arith.truncf %107 : vector<1x128xf32> to vector<1x128xbf16>
    %c0_101 = arith.constant 0 : index
    %c128 = arith.constant 128 : index
    %109 = vector.load %arg19[%c0_101, %c128] : memref<2x256xbf16, #tpu.memory_space<vmem>>, vector<1x128xbf16>
    tpu.vector_store %arg19[%c0_101, %c128], %108 {strides = array<i32>} : memref<2x256xbf16, #tpu.memory_space<vmem>>, vector<1x128xbf16>,
    %cst_102 = arith.constant 0.000000e+00 : f32
    %110 = vector.broadcast %cst_102 : f32 to vector<16x32xf32>
    %c1_103 = arith.constant 1 : index
    %c0_104 = arith.constant 0 : index
    %c0_105 = arith.constant 0 : index
    %111 = vector.load %arg0[%c1_103, %c0_104, %c0_105] : memref<2x20x1xf32, #tpu.memory_space<vmem>>, vector<1x16x1xf32>
    %112 = vector.shape_cast %111 : vector<1x16x1xf32> to vector<16x1xf32>
    %c0_106 = arith.constant 0 : index
    %c0_107 = arith.constant 0 : index
    %113 = vector.load %arg1[%c0_106, %c0_107] : memref<5x32xf32, #tpu.memory_space<vmem>>, vector<1x32xf32>
    %114 = vector.broadcast %112 : vector<16x1xf32> to vector<16x32xf32>
    %115 = vector.broadcast %113 : vector<1x32xf32> to vector<16x32xf32>
    %116 = arith.mulf %114, %115 : vector<16x32xf32>
    %117 = arith.addf %110, %116 : vector<16x32xf32>
    %c1_108 = arith.constant 1 : index
    %c1_109 = arith.constant 1 : index
    %c0_110 = arith.constant 0 : index
    %118 = vector.load %arg0[%c1_108, %c1_109, %c0_110] : memref<2x20x1xf32, #tpu.memory_space<vmem>>, vector<1x16x1xf32>
    %119 = vector.shape_cast %118 : vector<1x16x1xf32> to vector<16x1xf32>
    %c1_111 = arith.constant 1 : index
    %c0_112 = arith.constant 0 : index
    %120 = vector.load %arg1[%c1_111, %c0_112] : memref<5x32xf32, #tpu.memory_space<vmem>>, vector<1x32xf32>
    %121 = vector.broadcast %119 : vector<16x1xf32> to vector<16x32xf32>
    %122 = vector.broadcast %120 : vector<1x32xf32> to vector<16x32xf32>
    %123 = arith.mulf %121, %122 : vector<16x32xf32>
    %124 = arith.addf %117, %123 : vector<16x32xf32>
    %c1_113 = arith.constant 1 : index
    %c2_114 = arith.constant 2 : index
    %c0_115 = arith.constant 0 : index
    %125 = vector.load %arg0[%c1_113, %c2_114, %c0_115] : memref<2x20x1xf32, #tpu.memory_space<vmem>>, vector<1x16x1xf32>
    %126 = vector.shape_cast %125 : vector<1x16x1xf32> to vector<16x1xf32>
    %c2_116 = arith.constant 2 : index
    %c0_117 = arith.constant 0 : index
    %127 = vector.load %arg1[%c2_116, %c0_117] : memref<5x32xf32, #tpu.memory_space<vmem>>, vector<1x32xf32>
    %128 = vector.broadcast %126 : vector<16x1xf32> to vector<16x32xf32>
    %129 = vector.broadcast %127 : vector<1x32xf32> to vector<16x32xf32>
    %130 = arith.mulf %128, %129 : vector<16x32xf32>
    %131 = arith.addf %124, %130 : vector<16x32xf32>
    %c1_118 = arith.constant 1 : index
    %c3_119 = arith.constant 3 : index
    %c0_120 = arith.constant 0 : index
    %132 = vector.load %arg0[%c1_118, %c3_119, %c0_120] : memref<2x20x1xf32, #tpu.memory_space<vmem>>, vector<1x16x1xf32>
    %133 = vector.shape_cast %132 : vector<1x16x1xf32> to vector<16x1xf32>
    %c3_121 = arith.constant 3 : index
    %c0_122 = arith.constant 0 : index
    %134 = vector.load %arg1[%c3_121, %c0_122] : memref<5x32xf32, #tpu.memory_space<vmem>>, vector<1x32xf32>
    %135 = vector.broadcast %133 : vector<16x1xf32> to vector<16x32xf32>
    %136 = vector.broadcast %134 : vector<1x32xf32> to vector<16x32xf32>
    %137 = arith.mulf %135, %136 : vector<16x32xf32>
    %138 = arith.addf %131, %137 : vector<16x32xf32>
    %c1_123 = arith.constant 1 : index
    %c4_124 = arith.constant 4 : index
    %c0_125 = arith.constant 0 : index
    %139 = vector.load %arg0[%c1_123, %c4_124, %c0_125] : memref<2x20x1xf32, #tpu.memory_space<vmem>>, vector<1x16x1xf32>
    %140 = vector.shape_cast %139 : vector<1x16x1xf32> to vector<16x1xf32>
    %c4_126 = arith.constant 4 : index
    %c0_127 = arith.constant 0 : index
    %141 = vector.load %arg1[%c4_126, %c0_127] : memref<5x32xf32, #tpu.memory_space<vmem>>, vector<1x32xf32>
    %142 = vector.broadcast %140 : vector<16x1xf32> to vector<16x32xf32>
    %143 = vector.broadcast %141 : vector<1x32xf32> to vector<16x32xf32>
    %144 = arith.mulf %142, %143 : vector<16x32xf32>
    %145 = arith.addf %138, %144 : vector<16x32xf32>
    %c0_128 = arith.constant 0 : index
    %c0_129 = arith.constant 0 : index
    %146 = vector.load %arg2[%c0_128, %c0_129] : memref<1x32xf32, #tpu.memory_space<vmem>>, vector<1x32xf32>
    %147 = vector.broadcast %146 : vector<1x32xf32> to vector<16x32xf32>
    %148 = arith.addf %145, %147 : vector<16x32xf32>
    %cst_130 = arith.constant 0.000000e+00 : f32
    %149 = vector.broadcast %cst_130 : f32 to vector<16x32xf32>
    %150 = arith.maximumf %148, %149 : vector<16x32xf32>
    %c0_131 = arith.constant 0 : index
    %c0_132 = arith.constant 0 : index
    %151 = vector.load %arg14[%c0_131, %c0_132] : memref<16x32xf32, #tpu.memory_space<vmem>>, vector<16x32xf32>
    tpu.vector_store %arg14[%c0_131, %c0_132], %150 {strides = array<i32>} : memref<16x32xf32, #tpu.memory_space<vmem>>, vector<16x32xf32>,
    %c0_133 = arith.constant 0 : index
    %c0_134 = arith.constant 0 : index
    %152 = tpu.strided_load %arg14[%c0_133, %c0_134] {strides = array<i32: 2, 1>} : memref<16x32xf32, #tpu.memory_space<vmem>>, vector<8x32xf32>
    %c1_135 = arith.constant 1 : index
    %c0_136 = arith.constant 0 : index
    %153 = tpu.strided_load %arg14[%c1_135, %c0_136] {strides = array<i32: 2, 1>} : memref<16x32xf32, #tpu.memory_space<vmem>>, vector<8x32xf32>
    %154 = arith.maximumf %152, %153 : vector<8x32xf32>
    %155 = arith.truncf %154 : vector<8x32xf32> to vector<8x32xbf16>
    %c1_137 = arith.constant 1 : index
    %c0_138 = arith.constant 0 : index
    %156 = vector.load %arg15[%c1_137, %c0_138] : memref<10x32xbf16, #tpu.memory_space<vmem>>, vector<8x32xbf16>
    tpu.vector_store %arg15[%c1_137, %c0_138], %155 {strides = array<i32>} : memref<10x32xbf16, #tpu.memory_space<vmem>>, vector<8x32xbf16>,
    %cst_139 = arith.constant 0.000000e+00 : f32
    %157 = vector.broadcast %cst_139 : f32 to vector<8x64xf32>
    %c0_140 = arith.constant 0 : index
    %c0_141 = arith.constant 0 : index
    %158 = vector.load %arg15[%c0_140, %c0_141] : memref<10x32xbf16, #tpu.memory_space<vmem>>, vector<8x32xbf16>
    %c0_142 = arith.constant 0 : index
    %c0_143 = arith.constant 0 : index
    %c0_144 = arith.constant 0 : index
    %159 = vector.load %arg3[%c0_142, %c0_143, %c0_144] : memref<3x32x64xbf16, #tpu.memory_space<vmem>>, vector<1x32x64xbf16>
    %160 = vector.shape_cast %159 : vector<1x32x64xbf16> to vector<32x64xbf16>
    %cst_145 = arith.constant dense<0.000000e+00> : vector<8x64xf32>
    %161 = tpu.matmul %158, %160, %cst_145 {dimension_numbers = #tpu.dot_dimension_numbers<[1], [0], [0], [1], [0, 0, 1, 1], [], []>} : vector<8x32xbf16>, vector<32x64xbf16>, vector<8x64xf32> -> vector<8x64xf32>
    %162 = arith.addf %157, %161 : vector<8x64xf32>
    %c1_146 = arith.constant 1 : index
    %c0_147 = arith.constant 0 : index
    %163 = vector.load %arg15[%c1_146, %c0_147] : memref<10x32xbf16, #tpu.memory_space<vmem>>, vector<8x32xbf16>
    %c1_148 = arith.constant 1 : index
    %c0_149 = arith.constant 0 : index
    %c0_150 = arith.constant 0 : index
    %164 = vector.load %arg3[%c1_148, %c0_149, %c0_150] : memref<3x32x64xbf16, #tpu.memory_space<vmem>>, vector<1x32x64xbf16>
    %165 = vector.shape_cast %164 : vector<1x32x64xbf16> to vector<32x64xbf16>
    %cst_151 = arith.constant dense<0.000000e+00> : vector<8x64xf32>
    %166 = tpu.matmul %163, %165, %cst_151 {dimension_numbers = #tpu.dot_dimension_numbers<[1], [0], [0], [1], [0, 0, 1, 1], [], []>} : vector<8x32xbf16>, vector<32x64xbf16>, vector<8x64xf32> -> vector<8x64xf32>
    %167 = arith.addf %162, %166 : vector<8x64xf32>
    %c2_152 = arith.constant 2 : index
    %c0_153 = arith.constant 0 : index
    %168 = vector.load %arg15[%c2_152, %c0_153] : memref<10x32xbf16, #tpu.memory_space<vmem>>, vector<8x32xbf16>
    %c2_154 = arith.constant 2 : index
    %c0_155 = arith.constant 0 : index
    %c0_156 = arith.constant 0 : index
    %169 = vector.load %arg3[%c2_154, %c0_155, %c0_156] : memref<3x32x64xbf16, #tpu.memory_space<vmem>>, vector<1x32x64xbf16>
    %170 = vector.shape_cast %169 : vector<1x32x64xbf16> to vector<32x64xbf16>
    %cst_157 = arith.constant dense<0.000000e+00> : vector<8x64xf32>
    %171 = tpu.matmul %168, %170, %cst_157 {dimension_numbers = #tpu.dot_dimension_numbers<[1], [0], [0], [1], [0, 0, 1, 1], [], []>} : vector<8x32xbf16>, vector<32x64xbf16>, vector<8x64xf32> -> vector<8x64xf32>
    %172 = arith.addf %167, %171 : vector<8x64xf32>
    %c0_158 = arith.constant 0 : index
    %c0_159 = arith.constant 0 : index
    %173 = vector.load %arg4[%c0_158, %c0_159] : memref<1x64xf32, #tpu.memory_space<vmem>>, vector<1x64xf32>
    %174 = vector.broadcast %173 : vector<1x64xf32> to vector<8x64xf32>
    %175 = arith.addf %172, %174 : vector<8x64xf32>
    %cst_160 = arith.constant 0.000000e+00 : f32
    %176 = vector.broadcast %cst_160 : f32 to vector<8x64xf32>
    %177 = arith.maximumf %175, %176 : vector<8x64xf32>
    %c0_161 = arith.constant 0 : index
    %c0_162 = arith.constant 0 : index
    %178 = vector.load %arg16[%c0_161, %c0_162] : memref<8x64xf32, #tpu.memory_space<vmem>>, vector<8x64xf32>
    tpu.vector_store %arg16[%c0_161, %c0_162], %177 {strides = array<i32>} : memref<8x64xf32, #tpu.memory_space<vmem>>, vector<8x64xf32>,
    %c0_163 = arith.constant 0 : index
    %c0_164 = arith.constant 0 : index
    %179 = tpu.strided_load %arg16[%c0_163, %c0_164] {strides = array<i32: 2, 1>} : memref<8x64xf32, #tpu.memory_space<vmem>>, vector<4x64xf32>
    %c1_165 = arith.constant 1 : index
    %c0_166 = arith.constant 0 : index
    %180 = tpu.strided_load %arg16[%c1_165, %c0_166] {strides = array<i32: 2, 1>} : memref<8x64xf32, #tpu.memory_space<vmem>>, vector<4x64xf32>
    %181 = arith.maximumf %179, %180 : vector<4x64xf32>
    %182 = arith.truncf %181 : vector<4x64xf32> to vector<4x64xbf16>
    %c1_167 = arith.constant 1 : index
    %c0_168 = arith.constant 0 : index
    %183 = vector.load %arg17[%c1_167, %c0_168] : memref<6x64xbf16, #tpu.memory_space<vmem>>, vector<4x64xbf16>
    tpu.vector_store %arg17[%c1_167, %c0_168], %182 {strides = array<i32>} : memref<6x64xbf16, #tpu.memory_space<vmem>>, vector<4x64xbf16>,
    %cst_169 = arith.constant 0.000000e+00 : f32
    %184 = vector.broadcast %cst_169 : f32 to vector<4x128xf32>
    %c0_170 = arith.constant 0 : index
    %c0_171 = arith.constant 0 : index
    %185 = vector.load %arg17[%c0_170, %c0_171] : memref<6x64xbf16, #tpu.memory_space<vmem>>, vector<4x64xbf16>
    %c0_172 = arith.constant 0 : index
    %c0_173 = arith.constant 0 : index
    %c0_174 = arith.constant 0 : index
    %186 = vector.load %arg5[%c0_172, %c0_173, %c0_174] : memref<3x64x128xbf16, #tpu.memory_space<vmem>>, vector<1x64x128xbf16>
    %187 = vector.shape_cast %186 : vector<1x64x128xbf16> to vector<64x128xbf16>
    %cst_175 = arith.constant dense<0.000000e+00> : vector<4x128xf32>
    %188 = tpu.matmul %185, %187, %cst_175 {dimension_numbers = #tpu.dot_dimension_numbers<[1], [0], [0], [1], [0, 0, 1, 1], [], []>} : vector<4x64xbf16>, vector<64x128xbf16>, vector<4x128xf32> -> vector<4x128xf32>
    %189 = arith.addf %184, %188 : vector<4x128xf32>
    %c1_176 = arith.constant 1 : index
    %c0_177 = arith.constant 0 : index
    %190 = vector.load %arg17[%c1_176, %c0_177] : memref<6x64xbf16, #tpu.memory_space<vmem>>, vector<4x64xbf16>
    %c1_178 = arith.constant 1 : index
    %c0_179 = arith.constant 0 : index
    %c0_180 = arith.constant 0 : index
    %191 = vector.load %arg5[%c1_178, %c0_179, %c0_180] : memref<3x64x128xbf16, #tpu.memory_space<vmem>>, vector<1x64x128xbf16>
    %192 = vector.shape_cast %191 : vector<1x64x128xbf16> to vector<64x128xbf16>
    %cst_181 = arith.constant dense<0.000000e+00> : vector<4x128xf32>
    %193 = tpu.matmul %190, %192, %cst_181 {dimension_numbers = #tpu.dot_dimension_numbers<[1], [0], [0], [1], [0, 0, 1, 1], [], []>} : vector<4x64xbf16>, vector<64x128xbf16>, vector<4x128xf32> -> vector<4x128xf32>
    %194 = arith.addf %189, %193 : vector<4x128xf32>
    %c2_182 = arith.constant 2 : index
    %c0_183 = arith.constant 0 : index
    %195 = vector.load %arg17[%c2_182, %c0_183] : memref<6x64xbf16, #tpu.memory_space<vmem>>, vector<4x64xbf16>
    %c2_184 = arith.constant 2 : index
    %c0_185 = arith.constant 0 : index
    %c0_186 = arith.constant 0 : index
    %196 = vector.load %arg5[%c2_184, %c0_185, %c0_186] : memref<3x64x128xbf16, #tpu.memory_space<vmem>>, vector<1x64x128xbf16>
    %197 = vector.shape_cast %196 : vector<1x64x128xbf16> to vector<64x128xbf16>
    %cst_187 = arith.constant dense<0.000000e+00> : vector<4x128xf32>
    %198 = tpu.matmul %195, %197, %cst_187 {dimension_numbers = #tpu.dot_dimension_numbers<[1], [0], [0], [1], [0, 0, 1, 1], [], []>} : vector<4x64xbf16>, vector<64x128xbf16>, vector<4x128xf32> -> vector<4x128xf32>
    %199 = arith.addf %194, %198 : vector<4x128xf32>
    %c0_188 = arith.constant 0 : index
    %c0_189 = arith.constant 0 : index
    %200 = vector.load %arg6[%c0_188, %c0_189] : memref<1x128xf32, #tpu.memory_space<vmem>>, vector<1x128xf32>
    %201 = vector.broadcast %200 : vector<1x128xf32> to vector<4x128xf32>
    %202 = arith.addf %199, %201 : vector<4x128xf32>
    %cst_190 = arith.constant 0.000000e+00 : f32
    %203 = vector.broadcast %cst_190 : f32 to vector<4x128xf32>
    %204 = arith.maximumf %202, %203 : vector<4x128xf32>
    %c0_191 = arith.constant 0 : index
    %c0_192 = arith.constant 0 : index
    %205 = vector.load %arg18[%c0_191, %c0_192] : memref<4x128xf32, #tpu.memory_space<vmem>>, vector<4x128xf32>
    tpu.vector_store %arg18[%c0_191, %c0_192], %204 {strides = array<i32>} : memref<4x128xf32, #tpu.memory_space<vmem>>, vector<4x128xf32>,
    %c0_193 = arith.constant 0 : index
    %c0_194 = arith.constant 0 : index
    %206 = vector.load %arg18[%c0_193, %c0_194] : memref<4x128xf32, #tpu.memory_space<vmem>>, vector<1x128xf32>
    %c1_195 = arith.constant 1 : index
    %c0_196 = arith.constant 0 : index
    %207 = vector.load %arg18[%c1_195, %c0_196] : memref<4x128xf32, #tpu.memory_space<vmem>>, vector<1x128xf32>
    %208 = arith.maximumf %206, %207 : vector<1x128xf32>
    %209 = arith.truncf %208 : vector<1x128xf32> to vector<1x128xbf16>
    %c1_197 = arith.constant 1 : index
    %c0_198 = arith.constant 0 : index
    %210 = vector.load %arg19[%c1_197, %c0_198] : memref<2x256xbf16, #tpu.memory_space<vmem>>, vector<1x128xbf16>
    tpu.vector_store %arg19[%c1_197, %c0_198], %209 {strides = array<i32>} : memref<2x256xbf16, #tpu.memory_space<vmem>>, vector<1x128xbf16>,
    %c2_199 = arith.constant 2 : index
    %c0_200 = arith.constant 0 : index
    %211 = vector.load %arg18[%c2_199, %c0_200] : memref<4x128xf32, #tpu.memory_space<vmem>>, vector<1x128xf32>
    %c3_201 = arith.constant 3 : index
    %c0_202 = arith.constant 0 : index
    %212 = vector.load %arg18[%c3_201, %c0_202] : memref<4x128xf32, #tpu.memory_space<vmem>>, vector<1x128xf32>
    %213 = arith.maximumf %211, %212 : vector<1x128xf32>
    %214 = arith.truncf %213 : vector<1x128xf32> to vector<1x128xbf16>
    %c1_203 = arith.constant 1 : index
    %c128_204 = arith.constant 128 : index
    %215 = vector.load %arg19[%c1_203, %c128_204] : memref<2x256xbf16, #tpu.memory_space<vmem>>, vector<1x128xbf16>
    tpu.vector_store %arg19[%c1_203, %c128_204], %214 {strides = array<i32>} : memref<2x256xbf16, #tpu.memory_space<vmem>>, vector<1x128xbf16>,
    %c0_205 = arith.constant 0 : index
    %c0_206 = arith.constant 0 : index
    %216 = vector.load %arg19[%c0_205, %c0_206] : memref<2x256xbf16, #tpu.memory_space<vmem>>, vector<2x256xbf16>
    %c0_207 = arith.constant 0 : index
    %c0_208 = arith.constant 0 : index
    %217 = vector.load %arg7[%c0_207, %c0_208] : memref<256x64xbf16, #tpu.memory_space<vmem>>, vector<256x64xbf16>
    %cst_209 = arith.constant dense<0.000000e+00> : vector<2x64xf32>
    %218 = tpu.matmul %216, %217, %cst_209 {dimension_numbers = #tpu.dot_dimension_numbers<[1], [0], [0], [1], [0, 0, 1, 1], [], []>} : vector<2x256xbf16>, vector<256x64xbf16>, vector<2x64xf32> -> vector<2x64xf32>
    %c0_210 = arith.constant 0 : index
    %c0_211 = arith.constant 0 : index
    %219 = vector.load %arg8[%c0_210, %c0_211] : memref<1x64xf32, #tpu.memory_space<vmem>>, vector<1x64xf32>
    %220 = vector.broadcast %219 : vector<1x64xf32> to vector<2x64xf32>
    %221 = arith.addf %218, %220 : vector<2x64xf32>
    %cst_212 = arith.constant 0.000000e+00 : f32
    %222 = vector.broadcast %cst_212 : f32 to vector<2x64xf32>
    %223 = arith.maximumf %221, %222 : vector<2x64xf32>
    %224 = arith.truncf %223 : vector<2x64xf32> to vector<2x64xbf16>
    %c0_213 = arith.constant 0 : index
    %c0_214 = arith.constant 0 : index
    %225 = vector.load %arg9[%c0_213, %c0_214] : memref<64x32xbf16, #tpu.memory_space<vmem>>, vector<64x32xbf16>
    %cst_215 = arith.constant dense<0.000000e+00> : vector<2x32xf32>
    %226 = tpu.matmul %224, %225, %cst_215 {dimension_numbers = #tpu.dot_dimension_numbers<[1], [0], [0], [1], [0, 0, 1, 1], [], []>} : vector<2x64xbf16>, vector<64x32xbf16>, vector<2x32xf32> -> vector<2x32xf32>
    %c0_216 = arith.constant 0 : index
    %c0_217 = arith.constant 0 : index
    %227 = vector.load %arg10[%c0_216, %c0_217] : memref<1x32xf32, #tpu.memory_space<vmem>>, vector<1x32xf32>
    %228 = vector.broadcast %227 : vector<1x32xf32> to vector<2x32xf32>
    %229 = arith.addf %226, %228 : vector<2x32xf32>
    %cst_218 = arith.constant 0.000000e+00 : f32
    %230 = vector.broadcast %cst_218 : f32 to vector<2x32xf32>
    %231 = arith.maximumf %229, %230 : vector<2x32xf32>
    %232 = arith.truncf %231 : vector<2x32xf32> to vector<2x32xbf16>
    %c0_219 = arith.constant 0 : index
    %c0_220 = arith.constant 0 : index
    %233 = vector.load %arg11[%c0_219, %c0_220] : memref<32x8xbf16, #tpu.memory_space<vmem>>, vector<32x8xbf16>
    %cst_221 = arith.constant dense<0.000000e+00> : vector<2x8xf32>
    %234 = tpu.matmul %232, %233, %cst_221 {dimension_numbers = #tpu.dot_dimension_numbers<[1], [0], [0], [1], [0, 0, 1, 1], [], []>} : vector<2x32xbf16>, vector<32x8xbf16>, vector<2x8xf32> -> vector<2x8xf32>
    %c0_222 = arith.constant 0 : index
    %c0_223 = arith.constant 0 : index
    %235 = vector.load %arg12[%c0_222, %c0_223] : memref<1x8xf32, #tpu.memory_space<vmem>>, vector<1x8xf32>
    %236 = vector.broadcast %235 : vector<1x8xf32> to vector<2x8xf32>
    %237 = arith.addf %234, %236 : vector<2x8xf32>
    %c0_224 = arith.constant 0 : index
    %c0_225 = arith.constant 0 : index
    %238 = vector.load %arg13[%c0_224, %c0_225] : memref<2x8xf32, #tpu.memory_space<vmem>>, vector<2x8xf32>
    tpu.vector_store %arg13[%c0_224, %c0_225], %237 {strides = array<i32>} : memref<2x8xf32, #tpu.memory_space<vmem>>, vector<2x8xf32>,
    return
  }
}

</mosaic_0001>

<llo_original>
// kernel: forward.1
$region0: #{forward.1}
  #allocation0 [shape = 'u32[]', space=smem, size = 0x4, offset = 0x4, fixed_abs, tag = 'smem constant byte address 0x4 - core index']
  #allocation1 [shape = 'u32[144,128]{1,0:T(1,128)}', space=vmem, size = 0x12000, scoped, tag = 'internal scratch']
  #allocation2 [shape = 'f32[16,32]{1,0:T(8,128)}', space=vmem, size = 0x2000, scoped, tag = 'scratch operand']
  #allocation3 [shape = 'bf16[10,32]{1,0:T(8,128)(2,1)}', space=vmem, size = 0x1000, scoped, tag = 'scratch operand']
  #allocation4 [shape = 'f32[8,64]{1,0:T(8,128)}', space=vmem, size = 0x1000, scoped, tag = 'scratch operand']
  #allocation5 [shape = 'bf16[6,64]{1,0:T(8,128)(2,1)}', space=vmem, size = 0x800, scoped, tag = 'scratch operand']
  #allocation6 [shape = 'f32[4,128]{1,0:T(4,128)}', space=vmem, size = 0x800, scoped, tag = 'scratch operand']
  #allocation7 [shape = 'bf16[2,256]{1,0:T(2,128)(2,1)}', space=vmem, size = 0x400, scoped, tag = 'scratch operand']
  %s0 = inlined_call_operand.vmem [shape: f32[2,20,1], index: 0, kind: input, shape index: {}]
  %s1 = inlined_call_operand.vmem [shape: f32[5,32], index: 1, kind: input, shape index: {}]
  %s2 = inlined_call_operand.vmem [shape: f32[1,32], index: 2, kind: input, shape index: {}]
  %s3 = inlined_call_operand.vmem [shape: bf16[3,32,64], index: 3, kind: input, shape index: {}]
  %s4 = inlined_call_operand.vmem [shape: f32[1,64], index: 4, kind: input, shape index: {}]
  %s5 = inlined_call_operand.vmem [shape: bf16[3,64,128], index: 5, kind: input, shape index: {}]
  %s6 = inlined_call_operand.vmem [shape: f32[1,128], index: 6, kind: input, shape index: {}]
  %s7 = inlined_call_operand.vmem [shape: bf16[256,64], index: 7, kind: input, shape index: {}]
  %s8 = inlined_call_operand.vmem [shape: f32[1,64], index: 8, kind: input, shape index: {}]
  %s9 = inlined_call_operand.vmem [shape: bf16[64,32], index: 9, kind: input, shape index: {}]
  %s10 = inlined_call_operand.vmem [shape: f32[1,32], index: 10, kind: input, shape index: {}]
  %s11 = inlined_call_operand.vmem [shape: bf16[32,8], index: 11, kind: input, shape index: {}]
  %s12 = inlined_call_operand.vmem [shape: f32[1,8], index: 12, kind: input, shape index: {}]
  %s13 = inlined_call_operand.hbm [shape: f32[2,8], index: 13, kind: output, shape index: {}]
  %s14 = sld [smem:[#allocation0]]
  $region62: #{forward.1} parent=0
    _
  %s16 = ssub.s32 1, %s14
  %s17 = scalar_select 0, %s16, %s14
  $region1: #{forward.1} parent=0
    #allocation8 [shape = 'u8[1024]{0}', space=vmem, size = 0x400, scoped, tag = 'output window, operand 0, single buffered']
    #allocation9 [shape = 's32[1]{0}', space=sflag, size = 0x4, scoped, tag = 'scoped memory for forward.1']
    %18 = vsyncpa [#allocation9], 0
    // Predicated region
    $region2: #{forward.1} parent=1 // pred_check
      _
    $region3: #{forward.1} parent=1 // pred_check_branch
      %20 = sbr.rel (0) target = $region5
    $region4: #{forward.1} parent=1 // pred_region
      _
    $region5: #{forward.1} parent=1 // pred_fallthru
      _
    // Predicated region
    $region6: #{forward.1} parent=1 // pred_check
      _
    $region7: #{forward.1} parent=1 // pred_check_branch
      %22 = sbr.rel (0) target = $region9
    $region8: #{forward.1} parent=1 // pred_region
      _
    $region9: #{forward.1} parent=1 // pred_fallthru
      _
    // Predicated region
    $region10: #{forward.1} parent=1 // pred_check
      _
    $region11: #{forward.1} parent=1 // pred_check_branch
      %24 = sbr.rel (0) target = $region13
    $region12: #{forward.1} parent=1 // pred_region
      _
    $region13: #{forward.1} parent=1 // pred_fallthru
      _
    // Predicated region
    $region14: #{forward.1} parent=1 // pred_check
      _
    $region15: #{forward.1} parent=1 // pred_check_branch
      %26 = sbr.rel (0) target = $region17
    $region16: #{forward.1} parent=1 // pred_region
      _
    $region17: #{forward.1} parent=1 // pred_fallthru
      _
    // Predicated region
    $region18: #{forward.1} parent=1 // pred_check
      _
    $region19: #{forward.1} parent=1 // pred_check_branch
      %28 = sbr.rel (0) target = $region21
    $region20: #{forward.1} parent=1 // pred_region
      _
    $region21: #{forward.1} parent=1 // pred_fallthru
      _
    // Predicated region
    $region22: #{forward.1} parent=1 // pred_check
      _
    $region23: #{forward.1} parent=1 // pred_check_branch
      %30 = sbr.rel (0) target = $region25
    $region24: #{forward.1} parent=1 // pred_region
      _
    $region25: #{forward.1} parent=1 // pred_fallthru
      _
    // Predicated region
    $region26: #{forward.1} parent=1 // pred_check
      _
    $region27: #{forward.1} parent=1 // pred_check_branch
      %32 = sbr.rel (0) target = $region29
    $region28: #{forward.1} parent=1 // pred_region
      _
    $region29: #{forward.1} parent=1 // pred_fallthru
      _
    // Predicated region
    $region30: #{forward.1} parent=1 // pred_check
      _
    $region31: #{forward.1} parent=1 // pred_check_branch
      %34 = sbr.rel (0) target = $region33
    $region32: #{forward.1} parent=1 // pred_region
      _
    $region33: #{forward.1} parent=1 // pred_fallthru
      _
    // Predicated region
    $region34: #{forward.1} parent=1 // pred_check
      _
    $region35: #{forward.1} parent=1 // pred_check_branch
      %36 = sbr.rel (0) target = $region37
    $region36: #{forward.1} parent=1 // pred_region
      _
    $region37: #{forward.1} parent=1 // pred_fallthru
      _
    // Predicated region
    $region38: #{forward.1} parent=1 // pred_check
      _
    $region39: #{forward.1} parent=1 // pred_check_branch
      %38 = sbr.rel (0) target = $region41
    $region40: #{forward.1} parent=1 // pred_region
      _
    $region41: #{forward.1} parent=1 // pred_fallthru
      _
    // Predicated region
    $region42: #{forward.1} parent=1 // pred_check
      _
    $region43: #{forward.1} parent=1 // pred_check_branch
      %40 = sbr.rel (0) target = $region45
    $region44: #{forward.1} parent=1 // pred_region
      _
    $region45: #{forward.1} parent=1 // pred_fallthru
      _
    // Predicated region
    $region46: #{forward.1} parent=1 // pred_check
      _
    $region47: #{forward.1} parent=1 // pred_check_branch
      %42 = sbr.rel (0) target = $region49
    $region48: #{forward.1} parent=1 // pred_region
      _
    $region49: #{forward.1} parent=1 // pred_fallthru
      _
    // Predicated region
    $region50: #{forward.1} parent=1 // pred_check
      _
    $region51: #{forward.1} parent=1 // pred_check_branch
      %44 = sbr.rel (0) target = $region53
    $region52: #{forward.1} parent=1 // pred_region
      _
    $region53: #{forward.1} parent=1 // pred_fallthru
      _
    %vm46 = vcmask 257024
    %47 = vst.msk [vmem:[#allocation3] sm:$0xf] %vm46, 0
    %vm48 = vcmask 253952
    %49 = vst.msk [vmem:[#allocation3 + $0x4] sm:$0x1] %vm48, 0
    %vm50 = vcmask 518144
    %51 = vst.msk [vmem:[#allocation5] sm:$0x7] %vm50, 0
    %v52 = vld [vmem:[%s0] sm:$0xff]
    %v53 = vld [vmem:[%s0 + $0x8] sm:$0xff]
    %v54 = vld [vmem:[%s1] sm:$0x1]
    %56 = vset.pattern.permute.xlu0 0
    %57 = vperm.xlu0 %56, %v52
    %v58 = vpop.permute.xlu0 %57
    %61 = vset.pattern.permute.xlu0 0
    %62 = vperm.xlu0 %61, %v53
    %v63 = vpop.permute.xlu0 %62
    %v65 = vlaneseq
    %v66 = vshrl.u32 %v65, 7
    %v67 = vsub.s32 0, %v66
    %v68 = vrot.slane %v54, %v67
    %v69 = vmul.f32 %v58, %v68
    %v70 = vmul.f32 %v63, %v68
    %v71 = vadd.f32 %v69, 0.0
    %v72 = vadd.f32 %v70, 0.0
    %v73 = vld [vmem:[%s0 + $0x1] sm:$0xff]
    %v74 = vld [vmem:[%s0 + $0x9] sm:$0xff]
    %v75 = vld [vmem:[%s1 + $0x1] sm:$0x1]
    %77 = vset.pattern.permute.xlu0 0
    %78 = vperm.xlu0 %77, %v73
    %v79 = vpop.permute.xlu0 %78
    %82 = vset.pattern.permute.xlu0 0
    %83 = vperm.xlu0 %82, %v74
    %v84 = vpop.permute.xlu0 %83
    %v86 = vlaneseq
    %v87 = vshrl.u32 %v86, 7
    %v88 = vsub.s32 0, %v87
    %v89 = vrot.slane %v75, %v88
    %v90 = vmul.f32 %v79, %v89
    %v91 = vmul.f32 %v84, %v89
    %v92 = vadd.f32 %v71, %v90
    %v93 = vadd.f32 %v72, %v91
    %v94 = vld [vmem:[%s0 + $0x2] sm:$0xff]
    %v95 = vld [vmem:[%s0 + $0xa] sm:$0xff]
    %v96 = vld [vmem:[%s1 + $0x2] sm:$0x1]
    %98 = vset.pattern.permute.xlu0 0
    %99 = vperm.xlu0 %98, %v94
    %v100 = vpop.permute.xlu0 %99
    %103 = vset.pattern.permute.xlu0 0
    %104 = vperm.xlu0 %103, %v95
    %v105 = vpop.permute.xlu0 %104
    %v107 = vlaneseq
    %v108 = vshrl.u32 %v107, 7
    %v109 = vsub.s32 0, %v108
    %v110 = vrot.slane %v96, %v109
    %v111 = vmul.f32 %v100, %v110
    %v112 = vmul.f32 %v105, %v110
    %v113 = vadd.f32 %v92, %v111
    %v114 = vadd.f32 %v93, %v112
    %v115 = vld [vmem:[%s0 + $0x3] sm:$0xff]
    %v116 = vld [vmem:[%s0 + $0xb] sm:$0xff]
    %v117 = vld [vmem:[%s1 + $0x3] sm:$0x1]
    %119 = vset.pattern.permute.xlu0 0
    %120 = vperm.xlu0 %119, %v115
    %v121 = vpop.permute.xlu0 %120
    %124 = vset.pattern.permute.xlu0 0
    %125 = vperm.xlu0 %124, %v116
    %v126 = vpop.permute.xlu0 %125
    %v128 = vlaneseq
    %v129 = vshrl.u32 %v128, 7
    %v130 = vsub.s32 0, %v129
    %v131 = vrot.slane %v117, %v130
    %v132 = vmul.f32 %v121, %v131
    %v133 = vmul.f32 %v126, %v131
    %v134 = vadd.f32 %v113, %v132
    %v135 = vadd.f32 %v114, %v133
    %v136 = vld [vmem:[%s0 + $0x4] sm:$0xff]
    %v137 = vld [vmem:[%s0 + $0xc] sm:$0xff]
    %v138 = vld [vmem:[%s1 + $0x4] sm:$0x1]
    %140 = vset.pattern.permute.xlu0 0
    %141 = vperm.xlu0 %140, %v136
    %v142 = vpop.permute.xlu0 %141
    %145 = vset.pattern.permute.xlu0 0
    %146 = vperm.xlu0 %145, %v137
    %v147 = vpop.permute.xlu0 %146
    %v149 = vlaneseq
    %v150 = vshrl.u32 %v149, 7
    %v151 = vsub.s32 0, %v150
    %v152 = vrot.slane %v138, %v151
    %v153 = vmul.f32 %v142, %v152
    %v154 = vmul.f32 %v147, %v152
    %v155 = vadd.f32 %v134, %v153
    %v156 = vadd.f32 %v135, %v154
    %v157 = vld [vmem:[%s2] sm:$0x1]
    %v159 = vlaneseq
    %v160 = vshrl.u32 %v159, 7
    %v161 = vsub.s32 0, %v160
    %v162 = vrot.slane %v157, %v161
    %v164 = vadd.f32 %v155, %v162
    %v165 = vadd.f32 %v156, %v162
    %v166 = vmax.f32 %v164, 0.0
    %v167 = vmax.f32 %v165, 0.0
    %vm168 = vcmask 261120
    %169 = vst.msk [vmem:[#allocation2] sm:$0xff] %vm168, %v166
    %170 = vst.msk [vmem:[#allocation2 + $0x8] sm:$0xff] %vm168, %v167
    %v171 = vld [vmem:[#allocation2] ss:$2 sm:$0xff]
    %s172 = scalar_lea.vmem [#allocation2], 1
    %v173 = vld [vmem:[%s172] ss:$2 sm:$0xff]
    %v174 = vmax.f32 %v171, %v173
    %v175 = vpack.c.bf16 %v174, %v174
    %v177 = vunpack.c.l.b16 %v175
    %v178 = vpack.c.b16 %v177, %v177
    %v180 = vshrl.u32 %v178, 16
    %v182 = vrot.slane %v180, 7
    %v183 = vshll.u32 %v178, 16
    %v185 = vor.u32 %v182, %v183
    %v186 = vrot.slane %v182, 4
    %vm189 = vcmask 257024
    %vm190 = vsmask.f32 7938
    %vm191 = vmand %vm189, %vm190
    %v192 = vld [vmem:[#allocation3] sm:$0xf]
    %v193 = vsel %vm191, %v185, %v192
    %194 = vst [vmem:[#allocation3] sm:$0xf] %v193
    %vm195 = vcmask 253952
    %vm196 = vsmask.f32 256
    %vm197 = vmand %vm195, %vm196
    %v198 = vld [vmem:[#allocation3 + $0x4] sm:$0x1]
    %v199 = vsel %vm197, %v186, %v198
    %200 = vst [vmem:[#allocation3 + $0x4] sm:$0x1] %v199
    %v201 = vld [vmem:[#allocation3] sm:$0xf]
    %v202 = vld [vmem:[%s3] sm:$0xf]
    %v203 = vld [vmem:[%s3 + $0x4] sm:$0xf]
    %v204 = vld [vmem:[%s3 + $0x8] sm:$0xf]
    %v205 = vld [vmem:[%s3 + $0xc] sm:$0xf]
    %v206 = vld [vmem:[#allocation3 + $0x4] sm:$0x1]
    %s207 = scalar_lea.vmem %s3, 16
    %v208 = vld [vmem:[%s207] sm:$0xf]
    %v209 = vld [vmem:[%s207 + $0x4] sm:$0xf]
    %v210 = vld [vmem:[%s207 + $0x8] sm:$0xf]
    %v211 = vld [vmem:[%s207 + $0xc] sm:$0xf]
    %v214 = vunpack.c.l.b16 %v201
    %v215 = vunpack.c.l.b16 %v206
    %v216 = vpack.c.b16 %v215, %v214
    %v218 = vshrl.u32 %v216, 16
    %v220 = vshll.u32 %v216, 16
    %v222 = vrot.slane %v220, 1
    %v223 = vor.u32 %v218, %v222
    %v228 = vunpack.c.l.b16 %v208
    %v229 = vunpack.c.l.b16 %v209
    %v230 = vunpack.c.l.b16 %v210
    %v231 = vunpack.c.l.b16 %v211
    %v232 = vpack.c.b16 %v229, %v228
    %v233 = vpack.c.b16 %v231, %v230
    %v237 = vsel %vm168, %v223, 0
    %239 = vmatprep.subr.bf16.mxu0 0
    %240 = vmatpush1.bf16.msra.mxu0 %v232
    %241 = vmatprep.subr.bf16.mxu0 0
    %242 = vmatpush1.bf16.msra.mxu0 %v233
    %243 = vmatprep.subr.bf16.mxu0 0
    %244 = vmatpush1.bf16.msra.mxu0 0
    %245 = vmatprep.subr.bf16.mxu0 0
    %246 = vmatpush1.bf16.msra.mxu0 0
    %247 = vmatprep.subr.bf16.mxu0 0
    %248 = vmatpush1.bf16.msra.mxu0 0
    %249 = vmatprep.subr.bf16.mxu0 0
    %250 = vmatpush1.bf16.msra.mxu0 0
    %251 = vmatprep.subr.bf16.mxu0 0
    %252 = vmatpush1.bf16.msra.mxu0 0
    %253 = vmatprep.subr.bf16.mxu0 0
    %254 = vmatpush1.bf16.msra.mxu0 0
    %255 = vmatprep.subr.bf16.mxu0 0
    %256 = vmatpush1.bf16.msra.mxu0 0
    %257 = vmatprep.subr.bf16.mxu0 0
    %258 = vmatpush1.bf16.msra.mxu0 0
    %259 = vmatprep.subr.bf16.mxu0 0
    %260 = vmatpush1.bf16.msra.mxu0 0
    %261 = vmatprep.subr.bf16.mxu0 0
    %262 = vmatpush1.bf16.msra.mxu0 0
    %263 = vmatprep.subr.bf16.mxu0 0
    %264 = vmatpush1.bf16.msra.mxu0 0
    %265 = vmatprep.subr.bf16.mxu0 0
    %266 = vmatpush1.bf16.msra.mxu0 0
    %267 = vmatprep.subr.bf16.mxu0 0
    %268 = vmatpush1.bf16.msra.mxu0 0
    %269 = vmatprep.subr.bf16.mxu0 0
    %270 = vmatpush1.bf16.msra.mxu0 0
    %271 = vmatprep.mubr.bf16.mxu0 0
    %272 = vmatmul.mubr.bf16.gmra.mrb[0].mxu0 %v237
    %v273 = vpop.f32.mrb[0].mxu0
    %v274 = vadd.f32 0.0, %v273
    %v275 = vpop.f32.mrb[0].mxu0
    %v276 = vpop.f32.mrb[0].mxu0
    %v277 = vpop.f32.mrb[0].mxu0
    %278 = vdwg.mxu0
    %v283 = vunpack.c.l.b16 %v202
    %v284 = vunpack.c.l.b16 %v203
    %v285 = vunpack.c.l.b16 %v204
    %v286 = vunpack.c.l.b16 %v205
    %v287 = vpack.c.b16 %v284, %v283
    %v288 = vpack.c.b16 %v286, %v285
    %v292 = vsel %vm168, %v201, 0
    %294 = vmatprep.subr.bf16.mxu0 0
    %295 = vmatpush1.bf16.msra.mxu0 %v287
    %296 = vmatprep.subr.bf16.mxu0 0
    %297 = vmatpush1.bf16.msra.mxu0 %v288
    %298 = vmatprep.subr.bf16.mxu0 0
    %299 = vmatpush1.bf16.msra.mxu0 0
    %300 = vmatprep.subr.bf16.mxu0 0
    %301 = vmatpush1.bf16.msra.mxu0 0
    %302 = vmatprep.subr.bf16.mxu0 0
    %303 = vmatpush1.bf16.msra.mxu0 0
    %304 = vmatprep.subr.bf16.mxu0 0
    %305 = vmatpush1.bf16.msra.mxu0 0
    %306 = vmatprep.subr.bf16.mxu0 0
    %307 = vmatpush1.bf16.msra.mxu0 0
    %308 = vmatprep.subr.bf16.mxu0 0
    %309 = vmatpush1.bf16.msra.mxu0 0
    %310 = vmatprep.subr.bf16.mxu0 0
    %311 = vmatpush1.bf16.msra.mxu0 0
    %312 = vmatprep.subr.bf16.mxu0 0
    %313 = vmatpush1.bf16.msra.mxu0 0
    %314 = vmatprep.subr.bf16.mxu0 0
    %315 = vmatpush1.bf16.msra.mxu0 0
    %316 = vmatprep.subr.bf16.mxu0 0
    %317 = vmatpush1.bf16.msra.mxu0 0
    %318 = vmatprep.subr.bf16.mxu0 0
    %319 = vmatpush1.bf16.msra.mxu0 0
    %320 = vmatprep.subr.bf16.mxu0 0
    %321 = vmatpush1.bf16.msra.mxu0 0
    %322 = vmatprep.subr.bf16.mxu0 0
    %323 = vmatpush1.bf16.msra.mxu0 0
    %324 = vmatprep.subr.bf16.mxu0 0
    %325 = vmatpush1.bf16.msra.mxu0 0
    %326 = vmatprep.mubr.bf16.mxu0 0
    %327 = vmatmul.mubr.bf16.gmra.mrb[0].mxu0 %v292
    %v328 = vpop.f32.mrb[0].mxu0
    %v329 = vadd.f32 %v274, %v328
    %v330 = vpop.f32.mrb[0].mxu0
    %v331 = vpop.f32.mrb[0].mxu0
    %v332 = vpop.f32.mrb[0].mxu0
    %333 = vdwg.mxu0
    %v334 = vld [vmem:[#allocation3] sm:$0xe]
    %s335 = scalar_lea.vmem %s3, 32
    %v336 = vld [vmem:[%s335] sm:$0xf]
    %v337 = vld [vmem:[%s335 + $0x4] sm:$0xf]
    %v338 = vld [vmem:[%s335 + $0x8] sm:$0xf]
    %v339 = vld [vmem:[%s335 + $0xc] sm:$0xf]
    %v341 = vunpack.c.l.b16 %v334
    %v342 = vpack.c.b16 %v215, %v341
    %v343 = vrot.slane %v342, 1
    %v348 = vunpack.c.l.b16 %v336
    %v349 = vunpack.c.l.b16 %v337
    %v350 = vunpack.c.l.b16 %v338
    %v351 = vunpack.c.l.b16 %v339
    %v352 = vpack.c.b16 %v349, %v348
    %v353 = vpack.c.b16 %v351, %v350
    %v357 = vsel %vm168, %v343, 0
    %359 = vmatprep.subr.bf16.mxu0 0
    %360 = vmatpush1.bf16.msra.mxu0 %v352
    %361 = vmatprep.subr.bf16.mxu0 0
    %362 = vmatpush1.bf16.msra.mxu0 %v353
    %363 = vmatprep.subr.bf16.mxu0 0
    %364 = vmatpush1.bf16.msra.mxu0 0
    %365 = vmatprep.subr.bf16.mxu0 0
    %366 = vmatpush1.bf16.msra.mxu0 0
    %367 = vmatprep.subr.bf16.mxu0 0
    %368 = vmatpush1.bf16.msra.mxu0 0
    %369 = vmatprep.subr.bf16.mxu0 0
    %370 = vmatpush1.bf16.msra.mxu0 0
    %371 = vmatprep.subr.bf16.mxu0 0
    %372 = vmatpush1.bf16.msra.mxu0 0
    %373 = vmatprep.subr.bf16.mxu0 0
    %374 = vmatpush1.bf16.msra.mxu0 0
    %375 = vmatprep.subr.bf16.mxu0 0
    %376 = vmatpush1.bf16.msra.mxu0 0
    %377 = vmatprep.subr.bf16.mxu0 0
    %378 = vmatpush1.bf16.msra.mxu0 0
    %379 = vmatprep.subr.bf16.mxu0 0
    %380 = vmatpush1.bf16.msra.mxu0 0
    %381 = vmatprep.subr.bf16.mxu0 0
    %382 = vmatpush1.bf16.msra.mxu0 0
    %383 = vmatprep.subr.bf16.mxu0 0
    %384 = vmatpush1.bf16.msra.mxu0 0
    %385 = vmatprep.subr.bf16.mxu0 0
    %386 = vmatpush1.bf16.msra.mxu0 0
    %387 = vmatprep.subr.bf16.mxu0 0
    %388 = vmatpush1.bf16.msra.mxu0 0
    %389 = vmatprep.subr.bf16.mxu0 0
    %390 = vmatpush1.bf16.msra.mxu0 0
    %391 = vmatprep.mubr.bf16.mxu0 0
    %392 = vmatmul.mubr.bf16.gmra.mrb[0].mxu0 %v357
    %v393 = vpop.f32.mrb[0].mxu0
    %v394 = vadd.f32 0.0, %v393
    %v395 = vpop.f32.mrb[0].mxu0
    %v396 = vpop.f32.mrb[0].mxu0
    %v397 = vpop.f32.mrb[0].mxu0
    %398 = vdwg.mxu0
    %v399 = vadd.f32 %v329, %v394
    %v400 = vld [vmem:[%s4] sm:$0x1]
    %v402 = vlaneseq
    %v403 = vshrl.u32 %v402, 7
    %v404 = vsub.s32 0, %v403
    %v405 = vrot.slane %v400, %v404
    %v407 = vadd.f32 %v399, %v405
    %v408 = vmax.f32 %v407, 0.0
    %vm409 = vcmask 523264
    %410 = vst.msk [vmem:[#allocation4] sm:$0xff] %vm409, %v408
    %v411 = vld [vmem:[#allocation4] ss:$2 sm:$0xf]
    %s412 = scalar_lea.vmem [#allocation4], 1
    %v413 = vld [vmem:[%s412] ss:$2 sm:$0xf]
    %v414 = vmax.f32 %v411, %v413
    %v415 = vpack.c.bf16 %v414, %v414
    %v417 = vunpack.c.l.b16 %v415
    %v418 = vpack.c.b16 %v417, %v417
    %v420 = vshrl.u32 %v418, 16
    %v422 = vrot.slane %v420, 7
    %v423 = vshll.u32 %v418, 16
    %v425 = vor.u32 %v422, %v423
    %vm427 = vcmask 518144
    %vm428 = vsmask.f32 2306
    %vm429 = vmand %vm427, %vm428
    %v430 = vld [vmem:[#allocation5] sm:$0x7]
    %v431 = vsel %vm429, %v425, %v430
    %432 = vst [vmem:[#allocation5] sm:$0x7] %v431
    %v433 = vld [vmem:[#allocation5] sm:$0x3]
    %v434 = vld [vmem:[%s5] sm:$0xf]
    %v435 = vld [vmem:[%s5 + $0x4] sm:$0xf]
    %v436 = vld [vmem:[%s5 + $0x8] sm:$0xf]
    %v437 = vld [vmem:[%s5 + $0xc] sm:$0xf]
    %v438 = vld [vmem:[%s5 + $0x10] sm:$0xf]
    %v439 = vld [vmem:[%s5 + $0x14] sm:$0xf]
    %v440 = vld [vmem:[%s5 + $0x18] sm:$0xf]
    %v441 = vld [vmem:[%s5 + $0x1c] sm:$0xf]
    %v442 = vld [vmem:[#allocation5] sm:$0x7]
    %s443 = scalar_lea.vmem %s5, 32
    %v444 = vld [vmem:[%s443] sm:$0xf]
    %v445 = vld [vmem:[%s443 + $0x4] sm:$0xf]
    %v446 = vld [vmem:[%s443 + $0x8] sm:$0xf]
    %v447 = vld [vmem:[%s443 + $0xc] sm:$0xf]
    %v448 = vld [vmem:[%s443 + $0x10] sm:$0xf]
    %v449 = vld [vmem:[%s443 + $0x14] sm:$0xf]
    %v450 = vld [vmem:[%s443 + $0x18] sm:$0xf]
    %v451 = vld [vmem:[%s443 + $0x1c] sm:$0xf]
    %v453 = vunpack.c.l.b16 %v442
    %v454 = vpack.c.b16 %v453, %v453
    %v456 = vshrl.u32 %v454, 16
    %v458 = vshll.u32 %v454, 16
    %v460 = vrot.slane %v458, 1
    %v461 = vor.u32 %v456, %v460
    %v470 = vunpack.c.l.b16 %v444
    %v471 = vunpack.c.l.b16 %v445
    %v472 = vunpack.c.l.b16 %v446
    %v473 = vunpack.c.l.b16 %v447
    %v474 = vunpack.c.l.b16 %v448
    %v475 = vunpack.c.l.b16 %v449
    %v476 = vunpack.c.l.b16 %v450
    %v477 = vunpack.c.l.b16 %v451
    %v478 = vpack.c.b16 %v471, %v470
    %v479 = vpack.c.b16 %v473, %v472
    %v480 = vpack.c.b16 %v475, %v474
    %v481 = vpack.c.b16 %v477, %v476
    %v487 = vsel %vm409, %v461, 0
    %489 = vmatprep.subr.bf16.mxu0 0
    %490 = vmatpush1.bf16.msra.mxu0 %v478
    %491 = vmatprep.subr.bf16.mxu0 0
    %492 = vmatpush1.bf16.msra.mxu0 %v479
    %493 = vmatprep.subr.bf16.mxu0 0
    %494 = vmatpush1.bf16.msra.mxu0 %v480
    %495 = vmatprep.subr.bf16.mxu0 0
    %496 = vmatpush1.bf16.msra.mxu0 %v481
    %497 = vmatprep.subr.bf16.mxu0 0
    %498 = vmatpush1.bf16.msra.mxu0 0
    %499 = vmatprep.subr.bf16.mxu0 0
    %500 = vmatpush1.bf16.msra.mxu0 0
    %501 = vmatprep.subr.bf16.mxu0 0
    %502 = vmatpush1.bf16.msra.mxu0 0
    %503 = vmatprep.subr.bf16.mxu0 0
    %504 = vmatpush1.bf16.msra.mxu0 0
    %505 = vmatprep.subr.bf16.mxu0 0
    %506 = vmatpush1.bf16.msra.mxu0 0
    %507 = vmatprep.subr.bf16.mxu0 0
    %508 = vmatpush1.bf16.msra.mxu0 0
    %509 = vmatprep.subr.bf16.mxu0 0
    %510 = vmatpush1.bf16.msra.mxu0 0
    %511 = vmatprep.subr.bf16.mxu0 0
    %512 = vmatpush1.bf16.msra.mxu0 0
    %513 = vmatprep.subr.bf16.mxu0 0
    %514 = vmatpush1.bf16.msra.mxu0 0
    %515 = vmatprep.subr.bf16.mxu0 0
    %516 = vmatpush1.bf16.msra.mxu0 0
    %517 = vmatprep.subr.bf16.mxu0 0
    %518 = vmatpush1.bf16.msra.mxu0 0
    %519 = vmatprep.subr.bf16.mxu0 0
    %520 = vmatpush1.bf16.msra.mxu0 0
    %521 = vmatprep.mubr.bf16.mxu0 0
    %522 = vmatmul.mubr.bf16.gmra.mrb[0].mxu0 %v487
    %v523 = vpop.f32.mrb[0].mxu0
    %v524 = vadd.f32 0.0, %v523
    %v525 = vpop.f32.mrb[0].mxu0
    %v526 = vpop.f32.mrb[0].mxu0
    %v527 = vpop.f32.mrb[0].mxu0
    %528 = vdwg.mxu0
    %v537 = vunpack.c.l.b16 %v434
    %v538 = vunpack.c.l.b16 %v435
    %v539 = vunpack.c.l.b16 %v436
    %v540 = vunpack.c.l.b16 %v437
    %v541 = vunpack.c.l.b16 %v438
    %v542 = vunpack.c.l.b16 %v439
    %v543 = vunpack.c.l.b16 %v440
    %v544 = vunpack.c.l.b16 %v441
    %v545 = vpack.c.b16 %v538, %v537
    %v546 = vpack.c.b16 %v540, %v539
    %v547 = vpack.c.b16 %v542, %v541
    %v548 = vpack.c.b16 %v544, %v543
    %v554 = vsel %vm409, %v433, 0
    %556 = vmatprep.subr.bf16.mxu0 0
    %557 = vmatpush1.bf16.msra.mxu0 %v545
    %558 = vmatprep.subr.bf16.mxu0 0
    %559 = vmatpush1.bf16.msra.mxu0 %v546
    %560 = vmatprep.subr.bf16.mxu0 0
    %561 = vmatpush1.bf16.msra.mxu0 %v547
    %562 = vmatprep.subr.bf16.mxu0 0
    %563 = vmatpush1.bf16.msra.mxu0 %v548
    %564 = vmatprep.subr.bf16.mxu0 0
    %565 = vmatpush1.bf16.msra.mxu0 0
    %566 = vmatprep.subr.bf16.mxu0 0
    %567 = vmatpush1.bf16.msra.mxu0 0
    %568 = vmatprep.subr.bf16.mxu0 0
    %569 = vmatpush1.bf16.msra.mxu0 0
    %570 = vmatprep.subr.bf16.mxu0 0
    %571 = vmatpush1.bf16.msra.mxu0 0
    %572 = vmatprep.subr.bf16.mxu0 0
    %573 = vmatpush1.bf16.msra.mxu0 0
    %574 = vmatprep.subr.bf16.mxu0 0
    %575 = vmatpush1.bf16.msra.mxu0 0
    %576 = vmatprep.subr.bf16.mxu0 0
    %577 = vmatpush1.bf16.msra.mxu0 0
    %578 = vmatprep.subr.bf16.mxu0 0
    %579 = vmatpush1.bf16.msra.mxu0 0
    %580 = vmatprep.subr.bf16.mxu0 0
    %581 = vmatpush1.bf16.msra.mxu0 0
    %582 = vmatprep.subr.bf16.mxu0 0
    %583 = vmatpush1.bf16.msra.mxu0 0
    %584 = vmatprep.subr.bf16.mxu0 0
    %585 = vmatpush1.bf16.msra.mxu0 0
    %586 = vmatprep.subr.bf16.mxu0 0
    %587 = vmatpush1.bf16.msra.mxu0 0
    %588 = vmatprep.mubr.bf16.mxu0 0
    %589 = vmatmul.mubr.bf16.gmra.mrb[0].mxu0 %v554
    %v590 = vpop.f32.mrb[0].mxu0
    %v591 = vadd.f32 %v524, %v590
    %v592 = vpop.f32.mrb[0].mxu0
    %v593 = vpop.f32.mrb[0].mxu0
    %v594 = vpop.f32.mrb[0].mxu0
    %595 = vdwg.mxu0
    %v596 = vld [vmem:[#allocation5] sm:$0x6]
    %s597 = scalar_lea.vmem %s5, 64
    %v598 = vld [vmem:[%s597] sm:$0xf]
    %v599 = vld [vmem:[%s597 + $0x4] sm:$0xf]
    %v600 = vld [vmem:[%s597 + $0x8] sm:$0xf]
    %v601 = vld [vmem:[%s597 + $0xc] sm:$0xf]
    %v602 = vld [vmem:[%s597 + $0x10] sm:$0xf]
    %v603 = vld [vmem:[%s597 + $0x14] sm:$0xf]
    %v604 = vld [vmem:[%s597 + $0x18] sm:$0xf]
    %v605 = vld [vmem:[%s597 + $0x1c] sm:$0xf]
    %v607 = vunpack.c.l.b16 %v596
    %v608 = vpack.c.b16 %v607, %v607
    %v609 = vrot.slane %v608, 1
    %v618 = vunpack.c.l.b16 %v598
    %v619 = vunpack.c.l.b16 %v599
    %v620 = vunpack.c.l.b16 %v600
    %v621 = vunpack.c.l.b16 %v601
    %v622 = vunpack.c.l.b16 %v602
    %v623 = vunpack.c.l.b16 %v603
    %v624 = vunpack.c.l.b16 %v604
    %v625 = vunpack.c.l.b16 %v605
    %v626 = vpack.c.b16 %v619, %v618
    %v627 = vpack.c.b16 %v621, %v620
    %v628 = vpack.c.b16 %v623, %v622
    %v629 = vpack.c.b16 %v625, %v624
    %v635 = vsel %vm409, %v609, 0
    %637 = vmatprep.subr.bf16.mxu0 0
    %638 = vmatpush1.bf16.msra.mxu0 %v626
    %639 = vmatprep.subr.bf16.mxu0 0
    %640 = vmatpush1.bf16.msra.mxu0 %v627
    %641 = vmatprep.subr.bf16.mxu0 0
    %642 = vmatpush1.bf16.msra.mxu0 %v628
    %643 = vmatprep.subr.bf16.mxu0 0
    %644 = vmatpush1.bf16.msra.mxu0 %v629
    %645 = vmatprep.subr.bf16.mxu0 0
    %646 = vmatpush1.bf16.msra.mxu0 0
    %647 = vmatprep.subr.bf16.mxu0 0
    %648 = vmatpush1.bf16.msra.mxu0 0
    %649 = vmatprep.subr.bf16.mxu0 0
    %650 = vmatpush1.bf16.msra.mxu0 0
    %651 = vmatprep.subr.bf16.mxu0 0
    %652 = vmatpush1.bf16.msra.mxu0 0
    %653 = vmatprep.subr.bf16.mxu0 0
    %654 = vmatpush1.bf16.msra.mxu0 0
    %655 = vmatprep.subr.bf16.mxu0 0
    %656 = vmatpush1.bf16.msra.mxu0 0
    %657 = vmatprep.subr.bf16.mxu0 0
    %658 = vmatpush1.bf16.msra.mxu0 0
    %659 = vmatprep.subr.bf16.mxu0 0
    %660 = vmatpush1.bf16.msra.mxu0 0
    %661 = vmatprep.subr.bf16.mxu0 0
    %662 = vmatpush1.bf16.msra.mxu0 0
    %663 = vmatprep.subr.bf16.mxu0 0
    %664 = vmatpush1.bf16.msra.mxu0 0
    %665 = vmatprep.subr.bf16.mxu0 0
    %666 = vmatpush1.bf16.msra.mxu0 0
    %667 = vmatprep.subr.bf16.mxu0 0
    %668 = vmatpush1.bf16.msra.mxu0 0
    %669 = vmatprep.mubr.bf16.mxu0 0
    %670 = vmatmul.mubr.bf16.gmra.mrb[0].mxu0 %v635
    %v671 = vpop.f32.mrb[0].mxu0
    %v672 = vadd.f32 0.0, %v671
    %v673 = vpop.f32.mrb[0].mxu0
    %v674 = vpop.f32.mrb[0].mxu0
    %v675 = vpop.f32.mrb[0].mxu0
    %676 = vdwg.mxu0
    %v677 = vadd.f32 %v591, %v672
    %v678 = vld [vmem:[%s6] sm:$0x1]
    %v680 = vlaneseq
    %v681 = vshrl.u32 %v680, 7
    %v682 = vsub.s32 0, %v681
    %v683 = vrot.slane %v678, %v682
    %v685 = vadd.f32 %v677, %v683
    %v686 = vmax.f32 %v685, 0.0
    %687 = vst [vmem:[#allocation6] sm:$0xf] %v686
    %v688 = vld [vmem:[#allocation6] sm:$0x1]
    %v689 = vld [vmem:[#allocation6 + $0x1] sm:$0x1]
    %v690 = vmax.f32 %v688, %v689
    %v691 = vpack.c.bf16 %v690, %v690
    %vm692 = vcmask 1040384
    %vm693 = vmand %vm692, %vm196
    %v694 = vld [vmem:[#allocation7] sm:$0x1]
    %v695 = vsel %vm693, %v691, %v694
    %696 = vst [vmem:[#allocation7] sm:$0x1] %v695
    %v697 = vld [vmem:[#allocation6 + $0x2] sm:$0x1]
    %v698 = vld [vmem:[#allocation6 + $0x3] sm:$0x1]
    %v699 = vmax.f32 %v697, %v698
    %v700 = vpack.c.bf16 %v699, %v699
    %v701 = vld [vmem:[#allocation7 + $0x1] sm:$0x1]
    %v702 = vsel %vm693, %v700, %v701
    %703 = vst [vmem:[#allocation7 + $0x1] sm:$0x1] %v702
    %s704 = scalar_lea.vmem %s0, 24
    %v705 = vld [vmem:[%s704] sm:$0xff]
    %v706 = vld [vmem:[%s704 + $0x8] sm:$0xff]
    %v707 = vld [vmem:[%s1] sm:$0x1]
    %709 = vset.pattern.permute.xlu0 0
    %710 = vperm.xlu0 %709, %v705
    %v711 = vpop.permute.xlu0 %710
    %714 = vset.pattern.permute.xlu0 0
    %715 = vperm.xlu0 %714, %v706
    %v716 = vpop.permute.xlu0 %715
    %v718 = vlaneseq
    %v719 = vshrl.u32 %v718, 7
    %v720 = vsub.s32 0, %v719
    %v721 = vrot.slane %v707, %v720
    %v722 = vmul.f32 %v711, %v721
    %v723 = vmul.f32 %v716, %v721
    %v724 = vadd.f32 %v722, 0.0
    %v725 = vadd.f32 %v723, 0.0
    %v726 = vld [vmem:[%s704 + $0x1] sm:$0xff]
    %v727 = vld [vmem:[%s704 + $0x9] sm:$0xff]
    %v728 = vld [vmem:[%s1 + $0x1] sm:$0x1]
    %730 = vset.pattern.permute.xlu0 0
    %731 = vperm.xlu0 %730, %v726
    %v732 = vpop.permute.xlu0 %731
    %735 = vset.pattern.permute.xlu0 0
    %736 = vperm.xlu0 %735, %v727
    %v737 = vpop.permute.xlu0 %736
    %v739 = vlaneseq
    %v740 = vshrl.u32 %v739, 7
    %v741 = vsub.s32 0, %v740
    %v742 = vrot.slane %v728, %v741
    %v743 = vmul.f32 %v732, %v742
    %v744 = vmul.f32 %v737, %v742
    %v745 = vadd.f32 %v724, %v743
    %v746 = vadd.f32 %v725, %v744
    %v747 = vld [vmem:[%s704 + $0x2] sm:$0xff]
    %v748 = vld [vmem:[%s704 + $0xa] sm:$0xff]
    %v749 = vld [vmem:[%s1 + $0x2] sm:$0x1]
    %751 = vset.pattern.permute.xlu0 0
    %752 = vperm.xlu0 %751, %v747
    %v753 = vpop.permute.xlu0 %752
    %756 = vset.pattern.permute.xlu0 0
    %757 = vperm.xlu0 %756, %v748
    %v758 = vpop.permute.xlu0 %757
    %v760 = vlaneseq
    %v761 = vshrl.u32 %v760, 7
    %v762 = vsub.s32 0, %v761
    %v763 = vrot.slane %v749, %v762
    %v764 = vmul.f32 %v753, %v763
    %v765 = vmul.f32 %v758, %v763
    %v766 = vadd.f32 %v745, %v764
    %v767 = vadd.f32 %v746, %v765
    %v768 = vld [vmem:[%s704 + $0x3] sm:$0xff]
    %v769 = vld [vmem:[%s704 + $0xb] sm:$0xff]
    %v770 = vld [vmem:[%s1 + $0x3] sm:$0x1]
    %772 = vset.pattern.permute.xlu0 0
    %773 = vperm.xlu0 %772, %v768
    %v774 = vpop.permute.xlu0 %773
    %777 = vset.pattern.permute.xlu0 0
    %778 = vperm.xlu0 %777, %v769
    %v779 = vpop.permute.xlu0 %778
    %v781 = vlaneseq
    %v782 = vshrl.u32 %v781, 7
    %v783 = vsub.s32 0, %v782
    %v784 = vrot.slane %v770, %v783
    %v785 = vmul.f32 %v774, %v784
    %v786 = vmul.f32 %v779, %v784
    %v787 = vadd.f32 %v766, %v785
    %v788 = vadd.f32 %v767, %v786
    %v789 = vld [vmem:[%s704 + $0x4] sm:$0xff]
    %v790 = vld [vmem:[%s704 + $0xc] sm:$0xff]
    %v791 = vld [vmem:[%s1 + $0x4] sm:$0x1]
    %793 = vset.pattern.permute.xlu0 0
    %794 = vperm.xlu0 %793, %v789
    %v795 = vpop.permute.xlu0 %794
    %798 = vset.pattern.permute.xlu0 0
    %799 = vperm.xlu0 %798, %v790
    %v800 = vpop.permute.xlu0 %799
    %v802 = vlaneseq
    %v803 = vshrl.u32 %v802, 7
    %v804 = vsub.s32 0, %v803
    %v805 = vrot.slane %v791, %v804
    %v806 = vmul.f32 %v795, %v805
    %v807 = vmul.f32 %v800, %v805
    %v808 = vadd.f32 %v787, %v806
    %v809 = vadd.f32 %v788, %v807
    %v810 = vld [vmem:[%s2] sm:$0x1]
    %v812 = vlaneseq
    %v813 = vshrl.u32 %v812, 7
    %v814 = vsub.s32 0, %v813
    %v815 = vrot.slane %v810, %v814
    %v817 = vadd.f32 %v808, %v815
    %v818 = vadd.f32 %v809, %v815
    %v819 = vmax.f32 %v817, 0.0
    %v820 = vmax.f32 %v818, 0.0
    %821 = vst.msk [vmem:[#allocation2] sm:$0xff] %vm168, %v819
    %822 = vst.msk [vmem:[#allocation2 + $0x8] sm:$0xff] %vm168, %v820
    %v823 = vld [vmem:[#allocation2] ss:$2 sm:$0xff]
    %v824 = vld [vmem:[%s172] ss:$2 sm:$0xff]
    %v825 = vmax.f32 %v823, %v824
    %v826 = vpack.c.bf16 %v825, %v825
    %v828 = vunpack.c.l.b16 %v826
    %v829 = vpack.c.b16 %v828, %v828
    %v831 = vshrl.u32 %v829, 16
    %v833 = vrot.slane %v831, 7
    %v834 = vshll.u32 %v829, 16
    %v836 = vor.u32 %v833, %v834
    %v837 = vrot.slane %v833, 4
    %v840 = vld [vmem:[#allocation3] sm:$0xf]
    %v841 = vsel %vm191, %v836, %v840
    %842 = vst [vmem:[#allocation3] sm:$0xf] %v841
    %v843 = vld [vmem:[#allocation3 + $0x4] sm:$0x1]
    %v844 = vsel %vm197, %v837, %v843
    %845 = vst [vmem:[#allocation3 + $0x4] sm:$0x1] %v844
    %v846 = vld [vmem:[#allocation3] sm:$0xf]
    %v847 = vld [vmem:[%s3] sm:$0xf]
    %v848 = vld [vmem:[%s3 + $0x4] sm:$0xf]
    %v849 = vld [vmem:[%s3 + $0x8] sm:$0xf]
    %v850 = vld [vmem:[%s3 + $0xc] sm:$0xf]
    %v851 = vld [vmem:[#allocation3 + $0x4] sm:$0x1]
    %v852 = vld [vmem:[%s207] sm:$0xf]
    %v853 = vld [vmem:[%s207 + $0x4] sm:$0xf]
    %v854 = vld [vmem:[%s207 + $0x8] sm:$0xf]
    %v855 = vld [vmem:[%s207 + $0xc] sm:$0xf]
    %v858 = vunpack.c.l.b16 %v846
    %v859 = vunpack.c.l.b16 %v851
    %v860 = vpack.c.b16 %v859, %v858
    %v862 = vshrl.u32 %v860, 16
    %v864 = vshll.u32 %v860, 16
    %v866 = vrot.slane %v864, 1
    %v867 = vor.u32 %v862, %v866
    %v872 = vunpack.c.l.b16 %v852
    %v873 = vunpack.c.l.b16 %v853
    %v874 = vunpack.c.l.b16 %v854
    %v875 = vunpack.c.l.b16 %v855
    %v876 = vpack.c.b16 %v873, %v872
    %v877 = vpack.c.b16 %v875, %v874
    %v881 = vsel %vm168, %v867, 0
    %883 = vmatprep.subr.bf16.mxu0 0
    %884 = vmatpush1.bf16.msra.mxu0 %v876
    %885 = vmatprep.subr.bf16.mxu0 0
    %886 = vmatpush1.bf16.msra.mxu0 %v877
    %887 = vmatprep.subr.bf16.mxu0 0
    %888 = vmatpush1.bf16.msra.mxu0 0
    %889 = vmatprep.subr.bf16.mxu0 0
    %890 = vmatpush1.bf16.msra.mxu0 0
    %891 = vmatprep.subr.bf16.mxu0 0
    %892 = vmatpush1.bf16.msra.mxu0 0
    %893 = vmatprep.subr.bf16.mxu0 0
    %894 = vmatpush1.bf16.msra.mxu0 0
    %895 = vmatprep.subr.bf16.mxu0 0
    %896 = vmatpush1.bf16.msra.mxu0 0
    %897 = vmatprep.subr.bf16.mxu0 0
    %898 = vmatpush1.bf16.msra.mxu0 0
    %899 = vmatprep.subr.bf16.mxu0 0
    %900 = vmatpush1.bf16.msra.mxu0 0
    %901 = vmatprep.subr.bf16.mxu0 0
    %902 = vmatpush1.bf16.msra.mxu0 0
    %903 = vmatprep.subr.bf16.mxu0 0
    %904 = vmatpush1.bf16.msra.mxu0 0
    %905 = vmatprep.subr.bf16.mxu0 0
    %906 = vmatpush1.bf16.msra.mxu0 0
    %907 = vmatprep.subr.bf16.mxu0 0
    %908 = vmatpush1.bf16.msra.mxu0 0
    %909 = vmatprep.subr.bf16.mxu0 0
    %910 = vmatpush1.bf16.msra.mxu0 0
    %911 = vmatprep.subr.bf16.mxu0 0
    %912 = vmatpush1.bf16.msra.mxu0 0
    %913 = vmatprep.subr.bf16.mxu0 0
    %914 = vmatpush1.bf16.msra.mxu0 0
    %915 = vmatprep.mubr.bf16.mxu0 0
    %916 = vmatmul.mubr.bf16.gmra.mrb[0].mxu0 %v881
    %v917 = vpop.f32.mrb[0].mxu0
    %v918 = vadd.f32 0.0, %v917
    %v919 = vpop.f32.mrb[0].mxu0
    %v920 = vpop.f32.mrb[0].mxu0
    %v921 = vpop.f32.mrb[0].mxu0
    %922 = vdwg.mxu0
    %v927 = vunpack.c.l.b16 %v847
    %v928 = vunpack.c.l.b16 %v848
    %v929 = vunpack.c.l.b16 %v849
    %v930 = vunpack.c.l.b16 %v850
    %v931 = vpack.c.b16 %v928, %v927
    %v932 = vpack.c.b16 %v930, %v929
    %v936 = vsel %vm168, %v846, 0
    %938 = vmatprep.subr.bf16.mxu0 0
    %939 = vmatpush1.bf16.msra.mxu0 %v931
    %940 = vmatprep.subr.bf16.mxu0 0
    %941 = vmatpush1.bf16.msra.mxu0 %v932
    %942 = vmatprep.subr.bf16.mxu0 0
    %943 = vmatpush1.bf16.msra.mxu0 0
    %944 = vmatprep.subr.bf16.mxu0 0
    %945 = vmatpush1.bf16.msra.mxu0 0
    %946 = vmatprep.subr.bf16.mxu0 0
    %947 = vmatpush1.bf16.msra.mxu0 0
    %948 = vmatprep.subr.bf16.mxu0 0
    %949 = vmatpush1.bf16.msra.mxu0 0
    %950 = vmatprep.subr.bf16.mxu0 0
    %951 = vmatpush1.bf16.msra.mxu0 0
    %952 = vmatprep.subr.bf16.mxu0 0
    %953 = vmatpush1.bf16.msra.mxu0 0
    %954 = vmatprep.subr.bf16.mxu0 0
    %955 = vmatpush1.bf16.msra.mxu0 0
    %956 = vmatprep.subr.bf16.mxu0 0
    %957 = vmatpush1.bf16.msra.mxu0 0
    %958 = vmatprep.subr.bf16.mxu0 0
    %959 = vmatpush1.bf16.msra.mxu0 0
    %960 = vmatprep.subr.bf16.mxu0 0
    %961 = vmatpush1.bf16.msra.mxu0 0
    %962 = vmatprep.subr.bf16.mxu0 0
    %963 = vmatpush1.bf16.msra.mxu0 0
    %964 = vmatprep.subr.bf16.mxu0 0
    %965 = vmatpush1.bf16.msra.mxu0 0
    %966 = vmatprep.subr.bf16.mxu0 0
    %967 = vmatpush1.bf16.msra.mxu0 0
    %968 = vmatprep.subr.bf16.mxu0 0
    %969 = vmatpush1.bf16.msra.mxu0 0
    %970 = vmatprep.mubr.bf16.mxu0 0
    %971 = vmatmul.mubr.bf16.gmra.mrb[0].mxu0 %v936
    %v972 = vpop.f32.mrb[0].mxu0
    %v973 = vadd.f32 %v918, %v972
    %v974 = vpop.f32.mrb[0].mxu0
    %v975 = vpop.f32.mrb[0].mxu0
    %v976 = vpop.f32.mrb[0].mxu0
    %977 = vdwg.mxu0
    %v978 = vld [vmem:[#allocation3] sm:$0xe]
    %v979 = vld [vmem:[%s335] sm:$0xf]
    %v980 = vld [vmem:[%s335 + $0x4] sm:$0xf]
    %v981 = vld [vmem:[%s335 + $0x8] sm:$0xf]
    %v982 = vld [vmem:[%s335 + $0xc] sm:$0xf]
    %v984 = vunpack.c.l.b16 %v978
    %v985 = vpack.c.b16 %v859, %v984
    %v986 = vrot.slane %v985, 1
    %v991 = vunpack.c.l.b16 %v979
    %v992 = vunpack.c.l.b16 %v980
    %v993 = vunpack.c.l.b16 %v981
    %v994 = vunpack.c.l.b16 %v982
    %v995 = vpack.c.b16 %v992, %v991
    %v996 = vpack.c.b16 %v994, %v993
    %v1000 = vsel %vm168, %v986, 0
    %1002 = vmatprep.subr.bf16.mxu0 0
    %1003 = vmatpush1.bf16.msra.mxu0 %v995
    %1004 = vmatprep.subr.bf16.mxu0 0
    %1005 = vmatpush1.bf16.msra.mxu0 %v996
    %1006 = vmatprep.subr.bf16.mxu0 0
    %1007 = vmatpush1.bf16.msra.mxu0 0
    %1008 = vmatprep.subr.bf16.mxu0 0
    %1009 = vmatpush1.bf16.msra.mxu0 0
    %1010 = vmatprep.subr.bf16.mxu0 0
    %1011 = vmatpush1.bf16.msra.mxu0 0
    %1012 = vmatprep.subr.bf16.mxu0 0
    %1013 = vmatpush1.bf16.msra.mxu0 0
    %1014 = vmatprep.subr.bf16.mxu0 0
    %1015 = vmatpush1.bf16.msra.mxu0 0
    %1016 = vmatprep.subr.bf16.mxu0 0
    %1017 = vmatpush1.bf16.msra.mxu0 0
    %1018 = vmatprep.subr.bf16.mxu0 0
    %1019 = vmatpush1.bf16.msra.mxu0 0
    %1020 = vmatprep.subr.bf16.mxu0 0
    %1021 = vmatpush1.bf16.msra.mxu0 0
    %1022 = vmatprep.subr.bf16.mxu0 0
    %1023 = vmatpush1.bf16.msra.mxu0 0
    %1024 = vmatprep.subr.bf16.mxu0 0
    %1025 = vmatpush1.bf16.msra.mxu0 0
    %1026 = vmatprep.subr.bf16.mxu0 0
    %1027 = vmatpush1.bf16.msra.mxu0 0
    %1028 = vmatprep.subr.bf16.mxu0 0
    %1029 = vmatpush1.bf16.msra.mxu0 0
    %1030 = vmatprep.subr.bf16.mxu0 0
    %1031 = vmatpush1.bf16.msra.mxu0 0
    %1032 = vmatprep.subr.bf16.mxu0 0
    %1033 = vmatpush1.bf16.msra.mxu0 0
    %1034 = vmatprep.mubr.bf16.mxu0 0
    %1035 = vmatmul.mubr.bf16.gmra.mrb[0].mxu0 %v1000
    %v1036 = vpop.f32.mrb[0].mxu0
    %v1037 = vadd.f32 0.0, %v1036
    %v1038 = vpop.f32.mrb[0].mxu0
    %v1039 = vpop.f32.mrb[0].mxu0
    %v1040 = vpop.f32.mrb[0].mxu0
    %1041 = vdwg.mxu0
    %v1042 = vadd.f32 %v973, %v1037
    %v1043 = vld [vmem:[%s4] sm:$0x1]
    %v1045 = vlaneseq
    %v1046 = vshrl.u32 %v1045, 7
    %v1047 = vsub.s32 0, %v1046
    %v1048 = vrot.slane %v1043, %v1047
    %v1050 = vadd.f32 %v1042, %v1048
    %v1051 = vmax.f32 %v1050, 0.0
    %1052 = vst.msk [vmem:[#allocation4] sm:$0xff] %vm409, %v1051
    %v1053 = vld [vmem:[#allocation4] ss:$2 sm:$0xf]
    %v1054 = vld [vmem:[%s412] ss:$2 sm:$0xf]
    %v1055 = vmax.f32 %v1053, %v1054
    %v1056 = vpack.c.bf16 %v1055, %v1055
    %v1058 = vunpack.c.l.b16 %v1056
    %v1059 = vpack.c.b16 %v1058, %v1058
    %v1061 = vshrl.u32 %v1059, 16
    %v1063 = vrot.slane %v1061, 7
    %v1064 = vshll.u32 %v1059, 16
    %v1066 = vor.u32 %v1063, %v1064
    %v1068 = vld [vmem:[#allocation5] sm:$0x7]
    %v1069 = vsel %vm429, %v1066, %v1068
    %1070 = vst [vmem:[#allocation5] sm:$0x7] %v1069
    %v1071 = vld [vmem:[#allocation5] sm:$0x3]
    %v1072 = vld [vmem:[%s5] sm:$0xf]
    %v1073 = vld [vmem:[%s5 + $0x4] sm:$0xf]
    %v1074 = vld [vmem:[%s5 + $0x8] sm:$0xf]
    %v1075 = vld [vmem:[%s5 + $0xc] sm:$0xf]
    %v1076 = vld [vmem:[%s5 + $0x10] sm:$0xf]
    %v1077 = vld [vmem:[%s5 + $0x14] sm:$0xf]
    %v1078 = vld [vmem:[%s5 + $0x18] sm:$0xf]
    %v1079 = vld [vmem:[%s5 + $0x1c] sm:$0xf]
    %v1080 = vld [vmem:[#allocation5] sm:$0x7]
    %v1081 = vld [vmem:[%s443] sm:$0xf]
    %v1082 = vld [vmem:[%s443 + $0x4] sm:$0xf]
    %v1083 = vld [vmem:[%s443 + $0x8] sm:$0xf]
    %v1084 = vld [vmem:[%s443 + $0xc] sm:$0xf]
    %v1085 = vld [vmem:[%s443 + $0x10] sm:$0xf]
    %v1086 = vld [vmem:[%s443 + $0x14] sm:$0xf]
    %v1087 = vld [vmem:[%s443 + $0x18] sm:$0xf]
    %v1088 = vld [vmem:[%s443 + $0x1c] sm:$0xf]
    %v1090 = vunpack.c.l.b16 %v1080
    %v1091 = vpack.c.b16 %v1090, %v1090
    %v1093 = vshrl.u32 %v1091, 16
    %v1095 = vshll.u32 %v1091, 16
    %v1097 = vrot.slane %v1095, 1
    %v1098 = vor.u32 %v1093, %v1097
    %v1107 = vunpack.c.l.b16 %v1081
    %v1108 = vunpack.c.l.b16 %v1082
    %v1109 = vunpack.c.l.b16 %v1083
    %v1110 = vunpack.c.l.b16 %v1084
    %v1111 = vunpack.c.l.b16 %v1085
    %v1112 = vunpack.c.l.b16 %v1086
    %v1113 = vunpack.c.l.b16 %v1087
    %v1114 = vunpack.c.l.b16 %v1088
    %v1115 = vpack.c.b16 %v1108, %v1107
    %v1116 = vpack.c.b16 %v1110, %v1109
    %v1117 = vpack.c.b16 %v1112, %v1111
    %v1118 = vpack.c.b16 %v1114, %v1113
    %v1124 = vsel %vm409, %v1098, 0
    %1126 = vmatprep.subr.bf16.mxu0 0
    %1127 = vmatpush1.bf16.msra.mxu0 %v1115
    %1128 = vmatprep.subr.bf16.mxu0 0
    %1129 = vmatpush1.bf16.msra.mxu0 %v1116
    %1130 = vmatprep.subr.bf16.mxu0 0
    %1131 = vmatpush1.bf16.msra.mxu0 %v1117
    %1132 = vmatprep.subr.bf16.mxu0 0
    %1133 = vmatpush1.bf16.msra.mxu0 %v1118
    %1134 = vmatprep.subr.bf16.mxu0 0
    %1135 = vmatpush1.bf16.msra.mxu0 0
    %1136 = vmatprep.subr.bf16.mxu0 0
    %1137 = vmatpush1.bf16.msra.mxu0 0
    %1138 = vmatprep.subr.bf16.mxu0 0
    %1139 = vmatpush1.bf16.msra.mxu0 0
    %1140 = vmatprep.subr.bf16.mxu0 0
    %1141 = vmatpush1.bf16.msra.mxu0 0
    %1142 = vmatprep.subr.bf16.mxu0 0
    %1143 = vmatpush1.bf16.msra.mxu0 0
    %1144 = vmatprep.subr.bf16.mxu0 0
    %1145 = vmatpush1.bf16.msra.mxu0 0
    %1146 = vmatprep.subr.bf16.mxu0 0
    %1147 = vmatpush1.bf16.msra.mxu0 0
    %1148 = vmatprep.subr.bf16.mxu0 0
    %1149 = vmatpush1.bf16.msra.mxu0 0
    %1150 = vmatprep.subr.bf16.mxu0 0
    %1151 = vmatpush1.bf16.msra.mxu0 0
    %1152 = vmatprep.subr.bf16.mxu0 0
    %1153 = vmatpush1.bf16.msra.mxu0 0
    %1154 = vmatprep.subr.bf16.mxu0 0
    %1155 = vmatpush1.bf16.msra.mxu0 0
    %1156 = vmatprep.subr.bf16.mxu0 0
    %1157 = vmatpush1.bf16.msra.mxu0 0
    %1158 = vmatprep.mubr.bf16.mxu0 0
    %1159 = vmatmul.mubr.bf16.gmra.mrb[0].mxu0 %v1124
    %v1160 = vpop.f32.mrb[0].mxu0
    %v1161 = vadd.f32 0.0, %v1160
    %v1162 = vpop.f32.mrb[0].mxu0
    %v1163 = vpop.f32.mrb[0].mxu0
    %v1164 = vpop.f32.mrb[0].mxu0
    %1165 = vdwg.mxu0
    %v1174 = vunpack.c.l.b16 %v1072
    %v1175 = vunpack.c.l.b16 %v1073
    %v1176 = vunpack.c.l.b16 %v1074
    %v1177 = vunpack.c.l.b16 %v1075
    %v1178 = vunpack.c.l.b16 %v1076
    %v1179 = vunpack.c.l.b16 %v1077
    %v1180 = vunpack.c.l.b16 %v1078
    %v1181 = vunpack.c.l.b16 %v1079
    %v1182 = vpack.c.b16 %v1175, %v1174
    %v1183 = vpack.c.b16 %v1177, %v1176
    %v1184 = vpack.c.b16 %v1179, %v1178
    %v1185 = vpack.c.b16 %v1181, %v1180
    %v1191 = vsel %vm409, %v1071, 0
    %1193 = vmatprep.subr.bf16.mxu0 0
    %1194 = vmatpush1.bf16.msra.mxu0 %v1182
    %1195 = vmatprep.subr.bf16.mxu0 0
    %1196 = vmatpush1.bf16.msra.mxu0 %v1183
    %1197 = vmatprep.subr.bf16.mxu0 0
    %1198 = vmatpush1.bf16.msra.mxu0 %v1184
    %1199 = vmatprep.subr.bf16.mxu0 0
    %1200 = vmatpush1.bf16.msra.mxu0 %v1185
    %1201 = vmatprep.subr.bf16.mxu0 0
    %1202 = vmatpush1.bf16.msra.mxu0 0
    %1203 = vmatprep.subr.bf16.mxu0 0
    %1204 = vmatpush1.bf16.msra.mxu0 0
    %1205 = vmatprep.subr.bf16.mxu0 0
    %1206 = vmatpush1.bf16.msra.mxu0 0
    %1207 = vmatprep.subr.bf16.mxu0 0
    %1208 = vmatpush1.bf16.msra.mxu0 0
    %1209 = vmatprep.subr.bf16.mxu0 0
    %1210 = vmatpush1.bf16.msra.mxu0 0
    %1211 = vmatprep.subr.bf16.mxu0 0
    %1212 = vmatpush1.bf16.msra.mxu0 0
    %1213 = vmatprep.subr.bf16.mxu0 0
    %1214 = vmatpush1.bf16.msra.mxu0 0
    %1215 = vmatprep.subr.bf16.mxu0 0
    %1216 = vmatpush1.bf16.msra.mxu0 0
    %1217 = vmatprep.subr.bf16.mxu0 0
    %1218 = vmatpush1.bf16.msra.mxu0 0
    %1219 = vmatprep.subr.bf16.mxu0 0
    %1220 = vmatpush1.bf16.msra.mxu0 0
    %1221 = vmatprep.subr.bf16.mxu0 0
    %1222 = vmatpush1.bf16.msra.mxu0 0
    %1223 = vmatprep.subr.bf16.mxu0 0
    %1224 = vmatpush1.bf16.msra.mxu0 0
    %1225 = vmatprep.mubr.bf16.mxu0 0
    %1226 = vmatmul.mubr.bf16.gmra.mrb[0].mxu0 %v1191
    %v1227 = vpop.f32.mrb[0].mxu0
    %v1228 = vadd.f32 %v1161, %v1227
    %v1229 = vpop.f32.mrb[0].mxu0
    %v1230 = vpop.f32.mrb[0].mxu0
    %v1231 = vpop.f32.mrb[0].mxu0
    %1232 = vdwg.mxu0
    %v1233 = vld [vmem:[#allocation5] sm:$0x6]
    %v1234 = vld [vmem:[%s597] sm:$0xf]
    %v1235 = vld [vmem:[%s597 + $0x4] sm:$0xf]
    %v1236 = vld [vmem:[%s597 + $0x8] sm:$0xf]
    %v1237 = vld [vmem:[%s597 + $0xc] sm:$0xf]
    %v1238 = vld [vmem:[%s597 + $0x10] sm:$0xf]
    %v1239 = vld [vmem:[%s597 + $0x14] sm:$0xf]
    %v1240 = vld [vmem:[%s597 + $0x18] sm:$0xf]
    %v1241 = vld [vmem:[%s597 + $0x1c] sm:$0xf]
    %v1243 = vunpack.c.l.b16 %v1233
    %v1244 = vpack.c.b16 %v1243, %v1243
    %v1245 = vrot.slane %v1244, 1
    %v1254 = vunpack.c.l.b16 %v1234
    %v1255 = vunpack.c.l.b16 %v1235
    %v1256 = vunpack.c.l.b16 %v1236
    %v1257 = vunpack.c.l.b16 %v1237
    %v1258 = vunpack.c.l.b16 %v1238
    %v1259 = vunpack.c.l.b16 %v1239
    %v1260 = vunpack.c.l.b16 %v1240
    %v1261 = vunpack.c.l.b16 %v1241
    %v1262 = vpack.c.b16 %v1255, %v1254
    %v1263 = vpack.c.b16 %v1257, %v1256
    %v1264 = vpack.c.b16 %v1259, %v1258
    %v1265 = vpack.c.b16 %v1261, %v1260
    %v1271 = vsel %vm409, %v1245, 0
    %1273 = vmatprep.subr.bf16.mxu0 0
    %1274 = vmatpush1.bf16.msra.mxu0 %v1262
    %1275 = vmatprep.subr.bf16.mxu0 0
    %1276 = vmatpush1.bf16.msra.mxu0 %v1263
    %1277 = vmatprep.subr.bf16.mxu0 0
    %1278 = vmatpush1.bf16.msra.mxu0 %v1264
    %1279 = vmatprep.subr.bf16.mxu0 0
    %1280 = vmatpush1.bf16.msra.mxu0 %v1265
    %1281 = vmatprep.subr.bf16.mxu0 0
    %1282 = vmatpush1.bf16.msra.mxu0 0
    %1283 = vmatprep.subr.bf16.mxu0 0
    %1284 = vmatpush1.bf16.msra.mxu0 0
    %1285 = vmatprep.subr.bf16.mxu0 0
    %1286 = vmatpush1.bf16.msra.mxu0 0
    %1287 = vmatprep.subr.bf16.mxu0 0
    %1288 = vmatpush1.bf16.msra.mxu0 0
    %1289 = vmatprep.subr.bf16.mxu0 0
    %1290 = vmatpush1.bf16.msra.mxu0 0
    %1291 = vmatprep.subr.bf16.mxu0 0
    %1292 = vmatpush1.bf16.msra.mxu0 0
    %1293 = vmatprep.subr.bf16.mxu0 0
    %1294 = vmatpush1.bf16.msra.mxu0 0
    %1295 = vmatprep.subr.bf16.mxu0 0
    %1296 = vmatpush1.bf16.msra.mxu0 0
    %1297 = vmatprep.subr.bf16.mxu0 0
    %1298 = vmatpush1.bf16.msra.mxu0 0
    %1299 = vmatprep.subr.bf16.mxu0 0
    %1300 = vmatpush1.bf16.msra.mxu0 0
    %1301 = vmatprep.subr.bf16.mxu0 0
    %1302 = vmatpush1.bf16.msra.mxu0 0
    %1303 = vmatprep.subr.bf16.mxu0 0
    %1304 = vmatpush1.bf16.msra.mxu0 0
    %1305 = vmatprep.mubr.bf16.mxu0 0
    %1306 = vmatmul.mubr.bf16.gmra.mrb[0].mxu0 %v1271
    %v1307 = vpop.f32.mrb[0].mxu0
    %v1308 = vadd.f32 0.0, %v1307
    %v1309 = vpop.f32.mrb[0].mxu0
    %v1310 = vpop.f32.mrb[0].mxu0
    %v1311 = vpop.f32.mrb[0].mxu0
    %1312 = vdwg.mxu0
    %v1313 = vadd.f32 %v1228, %v1308
    %v1314 = vld [vmem:[%s6] sm:$0x1]
    %v1316 = vlaneseq
    %v1317 = vshrl.u32 %v1316, 7
    %v1318 = vsub.s32 0, %v1317
    %v1319 = vrot.slane %v1314, %v1318
    %v1321 = vadd.f32 %v1313, %v1319
    %v1322 = vmax.f32 %v1321, 0.0
    %1323 = vst [vmem:[#allocation6] sm:$0xf] %v1322
    %v1324 = vld [vmem:[#allocation6] sm:$0x1]
    %v1325 = vld [vmem:[#allocation6 + $0x1] sm:$0x1]
    %v1326 = vmax.f32 %v1324, %v1325
    %v1327 = vpack.c.bf16 %v1326, %v1326
    %v1330 = vunpack.c.l.s4 1966171168
    %v1331 = vunpack.c.0.s8 %v1330
    %v1332 = vlaneseq
    %v1333 = vshrl.u32 %v1332, 7
    %v1334 = vsub.s32 %v1331, %v1333
    %v1335 = vrot.slane %v1327, %v1334
    %v1337 = vunpack.c.l.s4 1966171168
    %v1338 = vunpack.c.0.s8 %v1337
    %v1339 = vlaneseq
    %v1340 = vshrl.u32 %v1339, 7
    %v1341 = vsub.s32 %v1338, %v1340
    %v1342 = vrot.slane %v1335, %v1341
    %v1344 = vshll.u32 %v1342, 16
    %vm1347 = vmand %vm692, %vm190
    %v1348 = vld [vmem:[#allocation7] sm:$0x1]
    %v1349 = vsel %vm1347, %v1344, %v1348
    %1350 = vst [vmem:[#allocation7] sm:$0x1] %v1349
    %v1351 = vld [vmem:[#allocation6 + $0x2] sm:$0x1]
    %v1352 = vld [vmem:[#allocation6 + $0x3] sm:$0x1]
    %v1353 = vmax.f32 %v1351, %v1352
    %v1354 = vpack.c.bf16 %v1353, %v1353
    %v1357 = vunpack.c.l.s4 1966171168
    %v1358 = vunpack.c.0.s8 %v1357
    %v1359 = vlaneseq
    %v1360 = vshrl.u32 %v1359, 7
    %v1361 = vsub.s32 %v1358, %v1360
    %v1362 = vrot.slane %v1354, %v1361
    %v1364 = vunpack.c.l.s4 1966171168
    %v1365 = vunpack.c.0.s8 %v1364
    %v1366 = vlaneseq
    %v1367 = vshrl.u32 %v1366, 7
    %v1368 = vsub.s32 %v1365, %v1367
    %v1369 = vrot.slane %v1362, %v1368
    %v1371 = vshll.u32 %v1369, 16
    %v1374 = vld [vmem:[#allocation7 + $0x1] sm:$0x1]
    %v1375 = vsel %vm1347, %v1371, %v1374
    %1376 = vst [vmem:[#allocation7 + $0x1] sm:$0x1] %v1375
    %v1377 = vld [vmem:[#allocation7] sm:$0x3]
    %v1378 = vld [vmem:[%s7] sm:$0xf]
    %v1379 = vld [vmem:[%s7 + $0x4] sm:$0xf]
    %v1380 = vld [vmem:[%s7 + $0x8] sm:$0xf]
    %v1381 = vld [vmem:[%s7 + $0xc] sm:$0xf]
    %v1382 = vld [vmem:[%s7 + $0x10] sm:$0xf]
    %v1383 = vld [vmem:[%s7 + $0x14] sm:$0xf]
    %v1384 = vld [vmem:[%s7 + $0x18] sm:$0xf]
    %v1385 = vld [vmem:[%s7 + $0x1c] sm:$0xf]
    %v1386 = vld [vmem:[%s7 + $0x20] sm:$0xf]
    %v1387 = vld [vmem:[%s7 + $0x24] sm:$0xf]
    %v1388 = vld [vmem:[%s7 + $0x28] sm:$0xf]
    %v1389 = vld [vmem:[%s7 + $0x2c] sm:$0xf]
    %v1390 = vld [vmem:[%s7 + $0x30] sm:$0xf]
    %v1391 = vld [vmem:[%s7 + $0x34] sm:$0xf]
    %v1392 = vld [vmem:[%s7 + $0x38] sm:$0xf]
    %v1393 = vld [vmem:[%s7 + $0x3c] sm:$0xf]
    %v1394 = vld [vmem:[%s7 + $0x40] sm:$0xf]
    %v1395 = vld [vmem:[%s7 + $0x44] sm:$0xf]
    %v1396 = vld [vmem:[%s7 + $0x48] sm:$0xf]
    %v1397 = vld [vmem:[%s7 + $0x4c] sm:$0xf]
    %v1398 = vld [vmem:[%s7 + $0x50] sm:$0xf]
    %v1399 = vld [vmem:[%s7 + $0x54] sm:$0xf]
    %v1400 = vld [vmem:[%s7 + $0x58] sm:$0xf]
    %v1401 = vld [vmem:[%s7 + $0x5c] sm:$0xf]
    %v1402 = vld [vmem:[%s7 + $0x60] sm:$0xf]
    %v1403 = vld [vmem:[%s7 + $0x64] sm:$0xf]
    %v1404 = vld [vmem:[%s7 + $0x68] sm:$0xf]
    %v1405 = vld [vmem:[%s7 + $0x6c] sm:$0xf]
    %v1406 = vld [vmem:[%s7 + $0x70] sm:$0xf]
    %v1407 = vld [vmem:[%s7 + $0x74] sm:$0xf]
    %v1408 = vld [vmem:[%s7 + $0x78] sm:$0xf]
    %v1409 = vld [vmem:[%s7 + $0x7c] sm:$0xf]
    %v1410 = vld [vmem:[%s8] sm:$0x1]
    %v1412 = vlaneseq
    %v1413 = vshrl.u32 %v1412, 7
    %v1414 = vsub.s32 0, %v1413
    %v1415 = vrot.slane %v1410, %v1414
    %v1419 = vunpack.c.l.s4 1966171168
    %v1420 = vunpack.c.0.s8 %v1419
    %v1421 = vlaneseq
    %v1422 = vshrl.u32 %v1421, 7
    %v1423 = vsub.s32 %v1420, %v1422
    %v1424 = vrot.slane %v1377, %v1423
    %v1425 = vcombine.high %v1424, %v1424
    %v1427 = vunpack.c.l.s4 1966171168
    %v1428 = vunpack.c.0.s8 %v1427
    %v1429 = vlaneseq
    %v1430 = vshrl.u32 %v1429, 7
    %v1431 = vsub.s32 %v1428, %v1430
    %v1432 = vrot.slane %v1424, %v1431
    %v1434 = vunpack.c.l.s4 1966171168
    %v1435 = vunpack.c.0.s8 %v1434
    %v1436 = vlaneseq
    %v1437 = vshrl.u32 %v1436, 7
    %v1438 = vsub.s32 %v1435, %v1437
    %v1439 = vrot.slane %v1425, %v1438
    %v1474 = vunpack.c.l.b16 %v1378
    %v1475 = vunpack.c.l.b16 %v1379
    %v1476 = vunpack.c.l.b16 %v1380
    %v1477 = vunpack.c.l.b16 %v1381
    %v1478 = vunpack.c.l.b16 %v1382
    %v1479 = vunpack.c.l.b16 %v1383
    %v1480 = vunpack.c.l.b16 %v1384
    %v1481 = vunpack.c.l.b16 %v1385
    %v1482 = vunpack.c.l.b16 %v1386
    %v1483 = vunpack.c.l.b16 %v1387
    %v1484 = vunpack.c.l.b16 %v1388
    %v1485 = vunpack.c.l.b16 %v1389
    %v1486 = vunpack.c.l.b16 %v1390
    %v1487 = vunpack.c.l.b16 %v1391
    %v1488 = vunpack.c.l.b16 %v1392
    %v1489 = vunpack.c.l.b16 %v1393
    %v1490 = vunpack.c.l.b16 %v1394
    %v1491 = vunpack.c.l.b16 %v1395
    %v1492 = vunpack.c.l.b16 %v1396
    %v1493 = vunpack.c.l.b16 %v1397
    %v1494 = vunpack.c.l.b16 %v1398
    %v1495 = vunpack.c.l.b16 %v1399
    %v1496 = vunpack.c.l.b16 %v1400
    %v1497 = vunpack.c.l.b16 %v1401
    %v1498 = vunpack.c.l.b16 %v1402
    %v1499 = vunpack.c.l.b16 %v1403
    %v1500 = vunpack.c.l.b16 %v1404
    %v1501 = vunpack.c.l.b16 %v1405
    %v1502 = vunpack.c.l.b16 %v1406
    %v1503 = vunpack.c.l.b16 %v1407
    %v1504 = vunpack.c.l.b16 %v1408
    %v1505 = vunpack.c.l.b16 %v1409
    %v1506 = vpack.c.b16 %v1475, %v1474
    %v1507 = vpack.c.b16 %v1477, %v1476
    %v1508 = vpack.c.b16 %v1479, %v1478
    %v1509 = vpack.c.b16 %v1481, %v1480
    %v1510 = vpack.c.b16 %v1483, %v1482
    %v1511 = vpack.c.b16 %v1485, %v1484
    %v1512 = vpack.c.b16 %v1487, %v1486
    %v1513 = vpack.c.b16 %v1489, %v1488
    %v1514 = vpack.c.b16 %v1491, %v1490
    %v1515 = vpack.c.b16 %v1493, %v1492
    %v1516 = vpack.c.b16 %v1495, %v1494
    %v1517 = vpack.c.b16 %v1497, %v1496
    %v1518 = vpack.c.b16 %v1499, %v1498
    %v1519 = vpack.c.b16 %v1501, %v1500
    %v1520 = vpack.c.b16 %v1503, %v1502
    %v1521 = vpack.c.b16 %v1505, %v1504
    %1538 = vmatprep.subr.bf16.mxu0 0
    %1539 = vmatpush1.bf16.msra.mxu0 %v1506
    %1540 = vmatprep.subr.bf16.mxu0 0
    %1541 = vmatpush1.bf16.msra.mxu0 %v1507
    %1542 = vmatprep.subr.bf16.mxu0 0
    %1543 = vmatpush1.bf16.msra.mxu0 %v1508
    %1544 = vmatprep.subr.bf16.mxu0 0
    %1545 = vmatpush1.bf16.msra.mxu0 %v1509
    %1546 = vmatprep.subr.bf16.mxu0 0
    %1547 = vmatpush1.bf16.msra.mxu0 %v1510
    %1548 = vmatprep.subr.bf16.mxu0 0
    %1549 = vmatpush1.bf16.msra.mxu0 %v1511
    %1550 = vmatprep.subr.bf16.mxu0 0
    %1551 = vmatpush1.bf16.msra.mxu0 %v1512
    %1552 = vmatprep.subr.bf16.mxu0 0
    %1553 = vmatpush1.bf16.msra.mxu0 %v1513
    %1554 = vmatprep.subr.bf16.mxu0 0
    %1555 = vmatpush1.bf16.msra.mxu0 %v1514
    %1556 = vmatprep.subr.bf16.mxu0 0
    %1557 = vmatpush1.bf16.msra.mxu0 %v1515
    %1558 = vmatprep.subr.bf16.mxu0 0
    %1559 = vmatpush1.bf16.msra.mxu0 %v1516
    %1560 = vmatprep.subr.bf16.mxu0 0
    %1561 = vmatpush1.bf16.msra.mxu0 %v1517
    %1562 = vmatprep.subr.bf16.mxu0 0
    %1563 = vmatpush1.bf16.msra.mxu0 %v1518
    %1564 = vmatprep.subr.bf16.mxu0 0
    %1565 = vmatpush1.bf16.msra.mxu0 %v1519
    %1566 = vmatprep.subr.bf16.mxu0 0
    %1567 = vmatpush1.bf16.msra.mxu0 %v1520
    %1568 = vmatprep.subr.bf16.mxu0 0
    %1569 = vmatpush1.bf16.msra.mxu0 %v1521
    %1570 = vmatprep.mubr.bf16.mxu0 %v1439
    %1571 = vmatmul.mubr.bf16.gmra.mrb[0].mxu0 %v1432
    %v1572 = vpop.f32.mrb[0].mxu0
    %v1573 = vadd.f32 %v1415, %v1572
    %v1574 = vpop.f32.mrb[0].mxu0
    %v1575 = vpop.f32.mrb[0].mxu0
    %v1576 = vpop.f32.mrb[0].mxu0
    %1577 = vdwg.mxu0
    %v1578 = vmax.f32 %v1573, 0.0
    %v1579 = vpack.c.bf16 %v1578, %v1578
    %v1580 = vld [vmem:[%s9] sm:$0xf]
    %v1581 = vld [vmem:[%s9 + $0x4] sm:$0xf]
    %v1582 = vld [vmem:[%s9 + $0x8] sm:$0xf]
    %v1583 = vld [vmem:[%s9 + $0xc] sm:$0xf]
    %v1584 = vld [vmem:[%s9 + $0x10] sm:$0xf]
    %v1585 = vld [vmem:[%s9 + $0x14] sm:$0xf]
    %v1586 = vld [vmem:[%s9 + $0x18] sm:$0xf]
    %v1587 = vld [vmem:[%s9 + $0x1c] sm:$0xf]
    %v1588 = vld [vmem:[%s10] sm:$0x1]
    %v1590 = vlaneseq
    %v1591 = vshrl.u32 %v1590, 7
    %v1592 = vsub.s32 0, %v1591
    %v1593 = vrot.slane %v1588, %v1592
    %v1603 = vunpack.c.l.b16 %v1580
    %v1604 = vunpack.c.l.b16 %v1581
    %v1605 = vunpack.c.l.b16 %v1582
    %v1606 = vunpack.c.l.b16 %v1583
    %v1607 = vunpack.c.l.b16 %v1584
    %v1608 = vunpack.c.l.b16 %v1585
    %v1609 = vunpack.c.l.b16 %v1586
    %v1610 = vunpack.c.l.b16 %v1587
    %v1611 = vpack.c.b16 %v1604, %v1603
    %v1612 = vpack.c.b16 %v1606, %v1605
    %v1613 = vpack.c.b16 %v1608, %v1607
    %v1614 = vpack.c.b16 %v1610, %v1609
    %v1620 = vsel %vm409, %v1579, 0
    %1622 = vmatprep.subr.bf16.mxu0 0
    %1623 = vmatpush1.bf16.msra.mxu0 %v1611
    %1624 = vmatprep.subr.bf16.mxu0 0
    %1625 = vmatpush1.bf16.msra.mxu0 %v1612
    %1626 = vmatprep.subr.bf16.mxu0 0
    %1627 = vmatpush1.bf16.msra.mxu0 %v1613
    %1628 = vmatprep.subr.bf16.mxu0 0
    %1629 = vmatpush1.bf16.msra.mxu0 %v1614
    %1630 = vmatprep.subr.bf16.mxu0 0
    %1631 = vmatpush1.bf16.msra.mxu0 0
    %1632 = vmatprep.subr.bf16.mxu0 0
    %1633 = vmatpush1.bf16.msra.mxu0 0
    %1634 = vmatprep.subr.bf16.mxu0 0
    %1635 = vmatpush1.bf16.msra.mxu0 0
    %1636 = vmatprep.subr.bf16.mxu0 0
    %1637 = vmatpush1.bf16.msra.mxu0 0
    %1638 = vmatprep.subr.bf16.mxu0 0
    %1639 = vmatpush1.bf16.msra.mxu0 0
    %1640 = vmatprep.subr.bf16.mxu0 0
    %1641 = vmatpush1.bf16.msra.mxu0 0
    %1642 = vmatprep.subr.bf16.mxu0 0
    %1643 = vmatpush1.bf16.msra.mxu0 0
    %1644 = vmatprep.subr.bf16.mxu0 0
    %1645 = vmatpush1.bf16.msra.mxu0 0
    %1646 = vmatprep.subr.bf16.mxu0 0
    %1647 = vmatpush1.bf16.msra.mxu0 0
    %1648 = vmatprep.subr.bf16.mxu0 0
    %1649 = vmatpush1.bf16.msra.mxu0 0
    %1650 = vmatprep.subr.bf16.mxu0 0
    %1651 = vmatpush1.bf16.msra.mxu0 0
    %1652 = vmatprep.subr.bf16.mxu0 0
    %1653 = vmatpush1.bf16.msra.mxu0 0
    %1654 = vmatprep.mubr.bf16.mxu0 0
    %1655 = vmatmul.mubr.bf16.gmra.mrb[0].mxu0 %v1620
    %v1656 = vpop.f32.mrb[0].mxu0
    %v1657 = vadd.f32 %v1593, %v1656
    %v1658 = vpop.f32.mrb[0].mxu0
    %v1659 = vpop.f32.mrb[0].mxu0
    %v1660 = vpop.f32.mrb[0].mxu0
    %1661 = vdwg.mxu0
    %v1662 = vmax.f32 %v1657, 0.0
    %v1663 = vpack.c.bf16 %v1662, %v1662
    %v1664 = vld [vmem:[%s11] sm:$0xf]
    %v1665 = vld [vmem:[%s11 + $0x4] sm:$0xf]
    %v1666 = vld [vmem:[%s11 + $0x8] sm:$0xf]
    %v1667 = vld [vmem:[%s11 + $0xc] sm:$0xf]
    %v1668 = vld [vmem:[%s12] sm:$0x1]
    %v1670 = vlaneseq
    %v1671 = vshrl.u32 %v1670, 7
    %v1672 = vsub.s32 0, %v1671
    %v1673 = vrot.slane %v1668, %v1672
    %v1679 = vunpack.c.l.b16 %v1664
    %v1680 = vunpack.c.l.b16 %v1665
    %v1681 = vunpack.c.l.b16 %v1666
    %v1682 = vunpack.c.l.b16 %v1667
    %v1683 = vpack.c.b16 %v1680, %v1679
    %v1684 = vpack.c.b16 %v1682, %v1681
    %v1688 = vsel %vm168, %v1663, 0
    %1690 = vmatprep.subr.bf16.mxu0 0
    %1691 = vmatpush1.bf16.msra.mxu0 %v1683
    %1692 = vmatprep.subr.bf16.mxu0 0
    %1693 = vmatpush1.bf16.msra.mxu0 %v1684
    %1694 = vmatprep.subr.bf16.mxu0 0
    %1695 = vmatpush1.bf16.msra.mxu0 0
    %1696 = vmatprep.subr.bf16.mxu0 0
    %1697 = vmatpush1.bf16.msra.mxu0 0
    %1698 = vmatprep.subr.bf16.mxu0 0
    %1699 = vmatpush1.bf16.msra.mxu0 0
    %1700 = vmatprep.subr.bf16.mxu0 0
    %1701 = vmatpush1.bf16.msra.mxu0 0
    %1702 = vmatprep.subr.bf16.mxu0 0
    %1703 = vmatpush1.bf16.msra.mxu0 0
    %1704 = vmatprep.subr.bf16.mxu0 0
    %1705 = vmatpush1.bf16.msra.mxu0 0
    %1706 = vmatprep.subr.bf16.mxu0 0
    %1707 = vmatpush1.bf16.msra.mxu0 0
    %1708 = vmatprep.subr.bf16.mxu0 0
    %1709 = vmatpush1.bf16.msra.mxu0 0
    %1710 = vmatprep.subr.bf16.mxu0 0
    %1711 = vmatpush1.bf16.msra.mxu0 0
    %1712 = vmatprep.subr.bf16.mxu0 0
    %1713 = vmatpush1.bf16.msra.mxu0 0
    %1714 = vmatprep.subr.bf16.mxu0 0
    %1715 = vmatpush1.bf16.msra.mxu0 0
    %1716 = vmatprep.subr.bf16.mxu0 0
    %1717 = vmatpush1.bf16.msra.mxu0 0
    %1718 = vmatprep.subr.bf16.mxu0 0
    %1719 = vmatpush1.bf16.msra.mxu0 0
    %1720 = vmatprep.subr.bf16.mxu0 0
    %1721 = vmatpush1.bf16.msra.mxu0 0
    %1722 = vmatprep.mubr.bf16.mxu0 0
    %1723 = vmatmul.mubr.bf16.gmra.mrb[0].mxu0 %v1688
    %v1724 = vpop.f32.mrb[0].mxu0
    %v1725 = vadd.f32 %v1673, %v1724
    %v1726 = vpop.f32.mrb[0].mxu0
    %v1727 = vpop.f32.mrb[0].mxu0
    %v1728 = vpop.f32.mrb[0].mxu0
    %1729 = vdwg.mxu0
    %vm1730 = vcmask 58368
    %1731 = vst.msk [vmem:[#allocation8] sm:$0x3] %vm1730, %v1725
    // Predicated region
    $region54: #{forward.1} parent=1 // pred_check
      _
    $region55: #{forward.1} parent=1 // pred_check_branch
      %1733 = sbr.rel (0) target = $region57
    $region56: #{forward.1} parent=1 // pred_region
      %s1735 = ssub.s32 32, 32
      %1736 = vsyncadd [#allocation9], %s1735
      %s1738 = sshll.u32 [#allocation8], 4
      %s1739 = int_to_ptr.vmem [resolvable:$true] %s1738
      %1741 = dma.vmem_to_hbm [thread:$0]  %s1739, 32, %s13, [#allocation9]
    $region57: #{forward.1} parent=1 // pred_fallthru
      _
    // Predicated region
    $region58: #{forward.1} parent=1 // pred_check
      _
    $region59: #{forward.1} parent=1 // pred_check_branch
      %1743 = sbr.rel (0) target = $region61
    $region60: #{forward.1} parent=1 // pred_region
      %1744 = dma.done [#allocation9], 32
    $region61: #{forward.1} parent=1 // pred_fallthru
      _
    %1745 = vsyncpa [#allocation9], 1

</llo_original>
